<compile_context>
chip_gen: v6e
topology: v6e:2x2x1
jax: 0.10.0
libtpu: 0.0.40
codegen_flags: <defaults>
</compile_context>

<pallas_src>
import jax
import jax.numpy as jnp
import numpy as np
from jax.experimental import pallas as pl
from jax.experimental.pallas import tpu as pltpu


def _round_up(x, m):
    return (x + m - 1) // m * m


def _make_conv_block_kernel(N, H, W, Cin, Cout):
    """Build the fused kernel as a closure over the static problem dims."""
    RW1 = (W + 2) * Cin                 # logical padded-row width, conv1 input
    RW2 = (W + 2) * Cout                # logical padded-row width, conv2 input
    RW1P = _round_up(RW1, 128)          # lane-aligned physical row width
    RW2P = _round_up(RW2, 128)
    M = N * H * W
    EPS = 1e-5
    SLOPE = 0.05
    INV_M = 1.0 / M

    def kernel(x_ref, w1_ref, g1_ref, b1_ref, w2_ref, g2_ref, b2_ref, gfold_ref,
               o_ref, xpad_ref, apad_ref):
        gfold = gfold_ref[...]          # (W*Cout, Cout) 0/1 channel-fold matrix

        def pad_rows(dst_ref, rows, c):
            # dst_ref: (N*(H+2), RWp).  The buffer is only a handful of vregs, so a
            # single full zero + one interior write per image is cheaper than
            # per-strip halo bookkeeping.  Interior starts at lane offset c (left halo).
            dst_ref[...] = jnp.zeros(dst_ref.shape, jnp.float32)
            for n in range(N):
                r0 = n * (H + 2) + 1
                dst_ref[r0:r0 + H, c:(W + 1) * c] = rows[n * H:(n + 1) * H, :]

        def im2col_rows(src_ref):
            # (N*H, 3*RWp): for each dy, stack the H padded rows (h+dy) of every image.
            # Slab width == physical lane width of src_ref, so the lane concat is
            # 128-aligned; zero pad lanes hit zero weight rows in the lifted weights.
            slabs = []
            for dy in range(3):
                parts = [src_ref[n * (H + 2) + dy:n * (H + 2) + dy + H, :]
                         for n in range(N)]
                slabs.append(parts[0] if N == 1 else jnp.concatenate(parts, axis=0))
            return jnp.concatenate(slabs, axis=1)

        def bn_leaky(y, g_row, b_row):
            # y: (N*H, W*Cout); channel of lane l is l % Cout.
            # One-pass batch stats folded to per-channel with the 0/1 matmul,
            # broadcast back with jnp.tile -> one mul+add per element, then LeakyReLU.
            ch_s = jnp.sum(jnp.dot(y, gfold, preferred_element_type=jnp.float32),
                           axis=0, keepdims=True)
            ch_ss = jnp.sum(jnp.dot(y * y, gfold, preferred_element_type=jnp.float32),
                            axis=0, keepdims=True)
            mean = ch_s * INV_M
            var = jnp.maximum(ch_ss * INV_M - mean * mean, 0.0)
            scale = g_row * jax.lax.rsqrt(var + EPS)          # (1, Cout)
            shift = b_row - mean * scale                      # (1, Cout)
            a = y * jnp.tile(scale, (1, W)) + jnp.tile(shift, (1, W))
            return jnp.where(a > 0, a, SLOPE * a)

        # ---- conv1: pad -> row im2col -> one MXU matmul -> BN + LeakyReLU ----
        pad_rows(xpad_ref, x_ref[...], Cin)
        p1 = im2col_rows(xpad_ref)                            # (N*H, 3*RW1P)
        y1 = jnp.dot(p1, w1_ref[...], preferred_element_type=jnp.float32)
        a1 = bn_leaky(y1, g1_ref[...], b1_ref[...])           # (N*H, W*Cout)

        # ---- conv2 ----
        pad_rows(apad_ref, a1, Cout)
        p2 = im2col_rows(apad_ref)                            # (N*H, 3*RW2P)
        y2 = jnp.dot(p2, w2_ref[...], preferred_element_type=jnp.float32)
        a2 = bn_leaky(y2, g2_ref[...], b2_ref[...])

        o_ref[...] = a2                                       # lane-dense, unmasked stores

    return kernel, RW1P, RW2P


def _lift_conv_weight(w_hwio, W, rwp):
    """(3,3,cin,cout) HWIO -> block-Toeplitz (3*rwp, W*cout).

    Row index (dy*rwp + i*cin + ci) matches the in-kernel patch lane order
    (padded-row position i, channel ci, per dy slab of width rwp); column index is
    w*cout + co (the lane-dense output layout).  Rows are lane-padded to rwp
    (a multiple of 128) with zeros so all in-kernel slabs stay 128-aligned.
    """
    kh, kw, cin, cout = w_hwio.shape
    wp2 = W + 2
    E = np.zeros((kw, wp2, W), np.float32)      # E[dx, w+dx, w] = 1
    for dx in range(kw):
        for w in range(W):
            E[dx, w + dx, w] = 1.0
    B = jnp.einsum('diw,ydco->yicwo', E, w_hwio.astype(jnp.float32))
    B = B.reshape(kh, wp2 * cin, W * cout)
    B = jnp.pad(B, ((0, 0), (0, rwp - wp2 * cin), (0, 0)))
    return B.reshape(kh * rwp, W * cout)


@jax.jit
def conv_block(x_nchw, w1, g1, b1, w2, g2, b2):
    """NCHW in / NCHW out (PyTorch convention).  Conv weights in HWIO layout
    (w_hwio = w_torch.permute(2, 3, 1, 0))."""
    N, Cin, H, W = x_nchw.shape
    Cout = w1.shape[-1]

    kernel, RW1P, RW2P = _make_conv_block_kernel(N, H, W, Cin, Cout)

    # Lane-dense activations: (N*H, W*C).
    x = jnp.transpose(x_nchw, (0, 2, 3, 1)).astype(jnp.float32).reshape(N * H, W * Cin)
    w1l = _lift_conv_weight(w1, W, RW1P)                      # (3*RW1P, W*Cout)
    w2l = _lift_conv_weight(w2, W, RW2P)                      # (3*RW2P, W*Cout)
    gfold = jnp.tile(jnp.eye(Cout, dtype=jnp.float32), (W, 1))  # (W*Cout, Cout)

    # Gridless, fully VMEM-resident design: check the (8,128)-tile-padded footprint.
    def padded_bytes(shape):
        r, c = shape
        return _round_up(r, 8) * _round_up(c, 128) * 4
    vmem_bytes = sum(padded_bytes(s) for s in [
        (N * H, W * Cin), (3 * RW1P, W * Cout), (3 * RW2P, W * Cout),
        (W * Cout, Cout), (N * H, W * Cout),
        (N * (H + 2), RW1P), (N * (H + 2), RW2P),
        (N * H, 3 * RW1P), (N * H, 3 * RW2P),   # headroom for in-register patch values
    ]) + 5 * padded_bytes((1, Cout))
    assert vmem_bytes < 24 * 1024 * 1024, (
        "ConvBlock kernel is gridless / fully VMEM-resident; re-tile with a grid "
        "(row bands + halo, two-pass BN) for shapes this large.")

    vmem = pltpu.MemorySpace.VMEM
    out2d = pl.pallas_call(
        kernel,
        out_shape=jax.ShapeDtypeStruct((N * H, W * Cout), jnp.float32),
        in_specs=[pl.BlockSpec(memory_space=vmem)] * 8,
        out_specs=pl.BlockSpec(memory_space=vmem),
        scratch_shapes=[
            pltpu.VMEM((N * (H + 2), RW1P), jnp.float32),     # padded conv1 input
            pltpu.VMEM((N * (H + 2), RW2P), jnp.float32),     # padded conv2 input
        ],
        compiler_params=pltpu.CompilerParams(vmem_limit_bytes=32 * 1024 * 1024),
    )(x, w1l,
      g1.reshape(1, -1).astype(jnp.float32), b1.reshape(1, -1).astype(jnp.float32),
      w2l,
      g2.reshape(1, -1).astype(jnp.float32), b2.reshape(1, -1).astype(jnp.float32),
      gfold)

    return jnp.transpose(out2d.reshape(N, H, W, Cout), (0, 3, 1, 2))   # -> NCHW


def conv_block_reference(x_nchw, w1, g1, b1, w2, g2, b2):
    """Pure-JAX reference of the same forward pass (for validation)."""
    dn = ('NHWC', 'HWIO', 'NHWC')
    eps, slope = 1e-5, 0.05
    y = jnp.transpose(x_nchw, (0, 2, 3, 1)).astype(jnp.float32)
    for w, g, b in ((w1, g1, b1), (w2, g2, b2)):
        y = jax.lax.conv_general_dilated(y, w, (1, 1), 'SAME', dimension_numbers=dn)
        m = y.mean((0, 1, 2))
        v = ((y - m) ** 2).mean((0, 1, 2))
        y = (y - m) * jax.lax.rsqrt(v + eps) * g + b
        y = jnp.where(y > 0, y, slope * y)
    return jnp.transpose(y, (0, 3, 1, 2))


if __name__ == "__main__":
    key = jax.random.PRNGKey(0)
    N, Cin, Cout, H, W = 2, 4, 8, 16, 16

    kx, kw1, kw2 = jax.random.split(key, 3)
    x = jax.random.normal(kx, (N, Cin, H, W), dtype=jnp.float32)

    # Conv weights in HWIO layout; BN affine at module init (gamma=1, beta=0).
    w1 = jax.random.normal(kw1, (3, 3, Cin, Cout), dtype=jnp.float32) * 0.1
    w2 = jax.random.normal(kw2, (3, 3, Cout, Cout), dtype=jnp.float32) * 0.1
    g1 = jnp.ones((Cout,), jnp.float32)
    b1 = jnp.zeros((Cout,), jnp.float32)
    g2 = jnp.ones((Cout,), jnp.float32)
    b2 = jnp.zeros((Cout,), jnp.float32)

    out = jax.block_until_ready(conv_block(x, w1, g1, b1, w2, g2, b2))
    ref = jax.block_until_ready(conv_block_reference(x, w1, g1, b1, w2, g2, b2))

    assert out.shape == (N, Cout, H, W)
    np.testing.assert_allclose(np.asarray(out), np.asarray(ref),
                               atol=5e-4, rtol=5e-4)
    print("KERNEL_OK")
</pallas_src>

<mosaic_0001>
module attributes {stable_mosaic.version = 11 : i64} {
  func.func @kernel(%arg0: memref<32x64xf32, #tpu.memory_space<vmem>>, %arg1: memref<384x128xf32, #tpu.memory_space<vmem>>, %arg2: memref<1x8xf32, #tpu.memory_space<vmem>>, %arg3: memref<1x8xf32, #tpu.memory_space<vmem>>, %arg4: memref<768x128xf32, #tpu.memory_space<vmem>>, %arg5: memref<1x8xf32, #tpu.memory_space<vmem>>, %arg6: memref<1x8xf32, #tpu.memory_space<vmem>>, %arg7: memref<128x8xf32, #tpu.memory_space<vmem>>, %arg8: memref<32x128xf32, #tpu.memory_space<vmem>>, %arg9: memref<36x128xf32, #tpu.memory_space<vmem>>, %arg10: memref<36x256xf32, #tpu.memory_space<vmem>>) attributes {dimension_semantics = [], scalar_prefetch = 0 : i64, scratch_operands = 2 : i64, tpu.core_type = #tpu.core_type<tc>} {
    %c0 = arith.constant 0 : index
    %c0_0 = arith.constant 0 : index
    %0 = vector.load %arg7[%c0, %c0_0] : memref<128x8xf32, #tpu.memory_space<vmem>>, vector<128x8xf32>
    %c0_1 = arith.constant 0 : index
    %c0_2 = arith.constant 0 : index
    %1 = vector.load %arg0[%c0_1, %c0_2] : memref<32x64xf32, #tpu.memory_space<vmem>>, vector<32x64xf32>
    %cst = arith.constant 0.000000e+00 : f32
    %2 = vector.broadcast %cst : f32 to vector<36x128xf32>
    %c0_3 = arith.constant 0 : index
    %c0_4 = arith.constant 0 : index
    %3 = vector.load %arg9[%c0_3, %c0_4] : memref<36x128xf32, #tpu.memory_space<vmem>>, vector<36x128xf32>
    tpu.vector_store %arg9[%c0_3, %c0_4], %2 {strides = array<i32>} : memref<36x128xf32, #tpu.memory_space<vmem>>, vector<36x128xf32>,
    %4 = vector.extract_strided_slice %1 {offsets = [0, 0], sizes = [16, 64], strides = [1, 1]} : vector<32x64xf32> to vector<16x64xf32>
    %c1 = arith.constant 1 : index
    %c4 = arith.constant 4 : index
    %5 = vector.load %arg9[%c1, %c4] : memref<36x128xf32, #tpu.memory_space<vmem>>, vector<16x64xf32>
    tpu.vector_store %arg9[%c1, %c4], %4 {strides = array<i32>} : memref<36x128xf32, #tpu.memory_space<vmem>>, vector<16x64xf32>,
    %6 = vector.extract_strided_slice %1 {offsets = [16, 0], sizes = [16, 64], strides = [1, 1]} : vector<32x64xf32> to vector<16x64xf32>
    %c19 = arith.constant 19 : index
    %c4_5 = arith.constant 4 : index
    %7 = vector.load %arg9[%c19, %c4_5] : memref<36x128xf32, #tpu.memory_space<vmem>>, vector<16x64xf32>
    tpu.vector_store %arg9[%c19, %c4_5], %6 {strides = array<i32>} : memref<36x128xf32, #tpu.memory_space<vmem>>, vector<16x64xf32>,
    %c0_6 = arith.constant 0 : index
    %c0_7 = arith.constant 0 : index
    %8 = vector.load %arg9[%c0_6, %c0_7] : memref<36x128xf32, #tpu.memory_space<vmem>>, vector<16x128xf32>
    %c18 = arith.constant 18 : index
    %c0_8 = arith.constant 0 : index
    %9 = vector.load %arg9[%c18, %c0_8] : memref<36x128xf32, #tpu.memory_space<vmem>>, vector<16x128xf32>
    %10 = tpu.concatenate %8, %9 in 0 : vector<16x128xf32>, vector<16x128xf32> -> vector<32x128xf32>
    %c1_9 = arith.constant 1 : index
    %c0_10 = arith.constant 0 : index
    %11 = vector.load %arg9[%c1_9, %c0_10] : memref<36x128xf32, #tpu.memory_space<vmem>>, vector<16x128xf32>
    %c19_11 = arith.constant 19 : index
    %c0_12 = arith.constant 0 : index
    %12 = vector.load %arg9[%c19_11, %c0_12] : memref<36x128xf32, #tpu.memory_space<vmem>>, vector<16x128xf32>
    %13 = tpu.concatenate %11, %12 in 0 : vector<16x128xf32>, vector<16x128xf32> -> vector<32x128xf32>
    %c2 = arith.constant 2 : index
    %c0_13 = arith.constant 0 : index
    %14 = vector.load %arg9[%c2, %c0_13] : memref<36x128xf32, #tpu.memory_space<vmem>>, vector<16x128xf32>
    %c20 = arith.constant 20 : index
    %c0_14 = arith.constant 0 : index
    %15 = vector.load %arg9[%c20, %c0_14] : memref<36x128xf32, #tpu.memory_space<vmem>>, vector<16x128xf32>
    %16 = tpu.concatenate %14, %15 in 0 : vector<16x128xf32>, vector<16x128xf32> -> vector<32x128xf32>
    %17 = tpu.concatenate %10, %13, %16 in 1 : vector<32x128xf32>, vector<32x128xf32>, vector<32x128xf32> -> vector<32x384xf32>
    %c0_15 = arith.constant 0 : index
    %c0_16 = arith.constant 0 : index
    %18 = vector.load %arg1[%c0_15, %c0_16] : memref<384x128xf32, #tpu.memory_space<vmem>>, vector<384x128xf32>
    %cst_17 = arith.constant dense<0.000000e+00> : vector<32x128xf32>
    %19 = tpu.matmul %17, %18, %cst_17 {dimension_numbers = #tpu.dot_dimension_numbers<[1], [0], [0], [1], [0, 0, 1, 1], [], []>} : vector<32x384xf32>, vector<384x128xf32>, vector<32x128xf32> -> vector<32x128xf32>
    %c0_18 = arith.constant 0 : index
    %c0_19 = arith.constant 0 : index
    %20 = vector.load %arg2[%c0_18, %c0_19] : memref<1x8xf32, #tpu.memory_space<vmem>>, vector<1x8xf32>
    %c0_20 = arith.constant 0 : index
    %c0_21 = arith.constant 0 : index
    %21 = vector.load %arg3[%c0_20, %c0_21] : memref<1x8xf32, #tpu.memory_space<vmem>>, vector<1x8xf32>
    %cst_22 = arith.constant dense<0.000000e+00> : vector<32x8xf32>
    %22 = tpu.matmul %19, %0, %cst_22 {dimension_numbers = #tpu.dot_dimension_numbers<[1], [0], [0], [1], [0, 0, 1, 1], [], []>} : vector<32x128xf32>, vector<128x8xf32>, vector<32x8xf32> -> vector<32x8xf32>
    %cst_23 = arith.constant dense<0.000000e+00> : vector<8xf32>
    %23 = vector.multi_reduction <add>, %22, %cst_23 [0] : vector<32x8xf32> to vector<8xf32>
    %24 = vector.shape_cast %23 : vector<8xf32> to vector<1x8xf32>
    %25 = arith.mulf %19, %19 : vector<32x128xf32>
    %cst_24 = arith.constant dense<0.000000e+00> : vector<32x8xf32>
    %26 = tpu.matmul %25, %0, %cst_24 {dimension_numbers = #tpu.dot_dimension_numbers<[1], [0], [0], [1], [0, 0, 1, 1], [], []>} : vector<32x128xf32>, vector<128x8xf32>, vector<32x8xf32> -> vector<32x8xf32>
    %cst_25 = arith.constant dense<0.000000e+00> : vector<8xf32>
    %27 = vector.multi_reduction <add>, %26, %cst_25 [0] : vector<32x8xf32> to vector<8xf32>
    %28 = vector.shape_cast %27 : vector<8xf32> to vector<1x8xf32>
    %cst_26 = arith.constant 0.001953125 : f32
    %29 = vector.broadcast %cst_26 : f32 to vector<1x8xf32>
    %30 = arith.mulf %24, %29 : vector<1x8xf32>
    %cst_27 = arith.constant 0.001953125 : f32
    %31 = vector.broadcast %cst_27 : f32 to vector<1x8xf32>
    %32 = arith.mulf %28, %31 : vector<1x8xf32>
    %33 = arith.mulf %30, %30 : vector<1x8xf32>
    %34 = arith.subf %32, %33 : vector<1x8xf32>
    %cst_28 = arith.constant 0.000000e+00 : f32
    %35 = vector.broadcast %cst_28 : f32 to vector<1x8xf32>
    %36 = arith.maximumf %34, %35 : vector<1x8xf32>
    %cst_29 = arith.constant 9.99999974E-6 : f32
    %37 = vector.broadcast %cst_29 : f32 to vector<1x8xf32>
    %38 = arith.addf %36, %37 : vector<1x8xf32>
    %39 = math.rsqrt %38 : vector<1x8xf32>
    %40 = arith.mulf %20, %39 : vector<1x8xf32>
    %41 = arith.mulf %30, %40 : vector<1x8xf32>
    %42 = arith.subf %21, %41 : vector<1x8xf32>
    %43 = tpu.concatenate %40, %40, %40, %40, %40, %40, %40, %40, %40, %40, %40, %40, %40, %40, %40, %40 in 1 : vector<1x8xf32>, vector<1x8xf32>, vector<1x8xf32>, vector<1x8xf32>, vector<1x8xf32>, vector<1x8xf32>, vector<1x8xf32>, vector<1x8xf32>, vector<1x8xf32>, vector<1x8xf32>, vector<1x8xf32>, vector<1x8xf32>, vector<1x8xf32>, vector<1x8xf32>, vector<1x8xf32>, vector<1x8xf32> -> vector<1x128xf32>
    %44 = vector.broadcast %43 : vector<1x128xf32> to vector<32x128xf32>
    %45 = arith.mulf %19, %44 : vector<32x128xf32>
    %46 = tpu.concatenate %42, %42, %42, %42, %42, %42, %42, %42, %42, %42, %42, %42, %42, %42, %42, %42 in 1 : vector<1x8xf32>, vector<1x8xf32>, vector<1x8xf32>, vector<1x8xf32>, vector<1x8xf32>, vector<1x8xf32>, vector<1x8xf32>, vector<1x8xf32>, vector<1x8xf32>, vector<1x8xf32>, vector<1x8xf32>, vector<1x8xf32>, vector<1x8xf32>, vector<1x8xf32>, vector<1x8xf32>, vector<1x8xf32> -> vector<1x128xf32>
    %47 = vector.broadcast %46 : vector<1x128xf32> to vector<32x128xf32>
    %48 = arith.addf %45, %47 : vector<32x128xf32>
    %cst_30 = arith.constant 0.000000e+00 : f32
    %49 = vector.broadcast %cst_30 : f32 to vector<32x128xf32>
    %50 = arith.cmpf ogt, %48, %49 : vector<32x128xf32>
    %cst_31 = arith.constant 5.000000e-02 : f32
    %51 = vector.broadcast %cst_31 : f32 to vector<32x128xf32>
    %52 = arith.mulf %51, %48 : vector<32x128xf32>
    %53 = arith.select %50, %48, %52 : vector<32x128xi1>, vector<32x128xf32>
    %cst_32 = arith.constant 0.000000e+00 : f32
    %54 = vector.broadcast %cst_32 : f32 to vector<36x256xf32>
    %c0_33 = arith.constant 0 : index
    %c0_34 = arith.constant 0 : index
    %55 = vector.load %arg10[%c0_33, %c0_34] : memref<36x256xf32, #tpu.memory_space<vmem>>, vector<36x256xf32>
    tpu.vector_store %arg10[%c0_33, %c0_34], %54 {strides = array<i32>} : memref<36x256xf32, #tpu.memory_space<vmem>>, vector<36x256xf32>,
    %56 = vector.extract_strided_slice %53 {offsets = [0, 0], sizes = [16, 128], strides = [1, 1]} : vector<32x128xf32> to vector<16x128xf32>
    %c1_35 = arith.constant 1 : index
    %c8 = arith.constant 8 : index
    %57 = vector.load %arg10[%c1_35, %c8] : memref<36x256xf32, #tpu.memory_space<vmem>>, vector<16x128xf32>
    tpu.vector_store %arg10[%c1_35, %c8], %56 {strides = array<i32>} : memref<36x256xf32, #tpu.memory_space<vmem>>, vector<16x128xf32>,
    %58 = vector.extract_strided_slice %53 {offsets = [16, 0], sizes = [16, 128], strides = [1, 1]} : vector<32x128xf32> to vector<16x128xf32>
    %c19_36 = arith.constant 19 : index
    %c8_37 = arith.constant 8 : index
    %59 = vector.load %arg10[%c19_36, %c8_37] : memref<36x256xf32, #tpu.memory_space<vmem>>, vector<16x128xf32>
    tpu.vector_store %arg10[%c19_36, %c8_37], %58 {strides = array<i32>} : memref<36x256xf32, #tpu.memory_space<vmem>>, vector<16x128xf32>,
    %c0_38 = arith.constant 0 : index
    %c0_39 = arith.constant 0 : index
    %60 = vector.load %arg10[%c0_38, %c0_39] : memref<36x256xf32, #tpu.memory_space<vmem>>, vector<16x256xf32>
    %c18_40 = arith.constant 18 : index
    %c0_41 = arith.constant 0 : index
    %61 = vector.load %arg10[%c18_40, %c0_41] : memref<36x256xf32, #tpu.memory_space<vmem>>, vector<16x256xf32>
    %62 = tpu.concatenate %60, %61 in 0 : vector<16x256xf32>, vector<16x256xf32> -> vector<32x256xf32>
    %c1_42 = arith.constant 1 : index
    %c0_43 = arith.constant 0 : index
    %63 = vector.load %arg10[%c1_42, %c0_43] : memref<36x256xf32, #tpu.memory_space<vmem>>, vector<16x256xf32>
    %c19_44 = arith.constant 19 : index
    %c0_45 = arith.constant 0 : index
    %64 = vector.load %arg10[%c19_44, %c0_45] : memref<36x256xf32, #tpu.memory_space<vmem>>, vector<16x256xf32>
    %65 = tpu.concatenate %63, %64 in 0 : vector<16x256xf32>, vector<16x256xf32> -> vector<32x256xf32>
    %c2_46 = arith.constant 2 : index
    %c0_47 = arith.constant 0 : index
    %66 = vector.load %arg10[%c2_46, %c0_47] : memref<36x256xf32, #tpu.memory_space<vmem>>, vector<16x256xf32>
    %c20_48 = arith.constant 20 : index
    %c0_49 = arith.constant 0 : index
    %67 = vector.load %arg10[%c20_48, %c0_49] : memref<36x256xf32, #tpu.memory_space<vmem>>, vector<16x256xf32>
    %68 = tpu.concatenate %66, %67 in 0 : vector<16x256xf32>, vector<16x256xf32> -> vector<32x256xf32>
    %69 = tpu.concatenate %62, %65, %68 in 1 : vector<32x256xf32>, vector<32x256xf32>, vector<32x256xf32> -> vector<32x768xf32>
    %c0_50 = arith.constant 0 : index
    %c0_51 = arith.constant 0 : index
    %70 = vector.load %arg4[%c0_50, %c0_51] : memref<768x128xf32, #tpu.memory_space<vmem>>, vector<768x128xf32>
    %cst_52 = arith.constant dense<0.000000e+00> : vector<32x128xf32>
    %71 = tpu.matmul %69, %70, %cst_52 {dimension_numbers = #tpu.dot_dimension_numbers<[1], [0], [0], [1], [0, 0, 1, 1], [], []>} : vector<32x768xf32>, vector<768x128xf32>, vector<32x128xf32> -> vector<32x128xf32>
    %c0_53 = arith.constant 0 : index
    %c0_54 = arith.constant 0 : index
    %72 = vector.load %arg5[%c0_53, %c0_54] : memref<1x8xf32, #tpu.memory_space<vmem>>, vector<1x8xf32>
    %c0_55 = arith.constant 0 : index
    %c0_56 = arith.constant 0 : index
    %73 = vector.load %arg6[%c0_55, %c0_56] : memref<1x8xf32, #tpu.memory_space<vmem>>, vector<1x8xf32>
    %cst_57 = arith.constant dense<0.000000e+00> : vector<32x8xf32>
    %74 = tpu.matmul %71, %0, %cst_57 {dimension_numbers = #tpu.dot_dimension_numbers<[1], [0], [0], [1], [0, 0, 1, 1], [], []>} : vector<32x128xf32>, vector<128x8xf32>, vector<32x8xf32> -> vector<32x8xf32>
    %cst_58 = arith.constant dense<0.000000e+00> : vector<8xf32>
    %75 = vector.multi_reduction <add>, %74, %cst_58 [0] : vector<32x8xf32> to vector<8xf32>
    %76 = vector.shape_cast %75 : vector<8xf32> to vector<1x8xf32>
    %77 = arith.mulf %71, %71 : vector<32x128xf32>
    %cst_59 = arith.constant dense<0.000000e+00> : vector<32x8xf32>
    %78 = tpu.matmul %77, %0, %cst_59 {dimension_numbers = #tpu.dot_dimension_numbers<[1], [0], [0], [1], [0, 0, 1, 1], [], []>} : vector<32x128xf32>, vector<128x8xf32>, vector<32x8xf32> -> vector<32x8xf32>
    %cst_60 = arith.constant dense<0.000000e+00> : vector<8xf32>
    %79 = vector.multi_reduction <add>, %78, %cst_60 [0] : vector<32x8xf32> to vector<8xf32>
    %80 = vector.shape_cast %79 : vector<8xf32> to vector<1x8xf32>
    %cst_61 = arith.constant 0.001953125 : f32
    %81 = vector.broadcast %cst_61 : f32 to vector<1x8xf32>
    %82 = arith.mulf %76, %81 : vector<1x8xf32>
    %cst_62 = arith.constant 0.001953125 : f32
    %83 = vector.broadcast %cst_62 : f32 to vector<1x8xf32>
    %84 = arith.mulf %80, %83 : vector<1x8xf32>
    %85 = arith.mulf %82, %82 : vector<1x8xf32>
    %86 = arith.subf %84, %85 : vector<1x8xf32>
    %cst_63 = arith.constant 0.000000e+00 : f32
    %87 = vector.broadcast %cst_63 : f32 to vector<1x8xf32>
    %88 = arith.maximumf %86, %87 : vector<1x8xf32>
    %cst_64 = arith.constant 9.99999974E-6 : f32
    %89 = vector.broadcast %cst_64 : f32 to vector<1x8xf32>
    %90 = arith.addf %88, %89 : vector<1x8xf32>
    %91 = math.rsqrt %90 : vector<1x8xf32>
    %92 = arith.mulf %72, %91 : vector<1x8xf32>
    %93 = arith.mulf %82, %92 : vector<1x8xf32>
    %94 = arith.subf %73, %93 : vector<1x8xf32>
    %95 = tpu.concatenate %92, %92, %92, %92, %92, %92, %92, %92, %92, %92, %92, %92, %92, %92, %92, %92 in 1 : vector<1x8xf32>, vector<1x8xf32>, vector<1x8xf32>, vector<1x8xf32>, vector<1x8xf32>, vector<1x8xf32>, vector<1x8xf32>, vector<1x8xf32>, vector<1x8xf32>, vector<1x8xf32>, vector<1x8xf32>, vector<1x8xf32>, vector<1x8xf32>, vector<1x8xf32>, vector<1x8xf32>, vector<1x8xf32> -> vector<1x128xf32>
    %96 = vector.broadcast %95 : vector<1x128xf32> to vector<32x128xf32>
    %97 = arith.mulf %71, %96 : vector<32x128xf32>
    %98 = tpu.concatenate %94, %94, %94, %94, %94, %94, %94, %94, %94, %94, %94, %94, %94, %94, %94, %94 in 1 : vector<1x8xf32>, vector<1x8xf32>, vector<1x8xf32>, vector<1x8xf32>, vector<1x8xf32>, vector<1x8xf32>, vector<1x8xf32>, vector<1x8xf32>, vector<1x8xf32>, vector<1x8xf32>, vector<1x8xf32>, vector<1x8xf32>, vector<1x8xf32>, vector<1x8xf32>, vector<1x8xf32>, vector<1x8xf32> -> vector<1x128xf32>
    %99 = vector.broadcast %98 : vector<1x128xf32> to vector<32x128xf32>
    %100 = arith.addf %97, %99 : vector<32x128xf32>
    %cst_65 = arith.constant 0.000000e+00 : f32
    %101 = vector.broadcast %cst_65 : f32 to vector<32x128xf32>
    %102 = arith.cmpf ogt, %100, %101 : vector<32x128xf32>
    %cst_66 = arith.constant 5.000000e-02 : f32
    %103 = vector.broadcast %cst_66 : f32 to vector<32x128xf32>
    %104 = arith.mulf %103, %100 : vector<32x128xf32>
    %105 = arith.select %102, %100, %104 : vector<32x128xi1>, vector<32x128xf32>
    %c0_67 = arith.constant 0 : index
    %c0_68 = arith.constant 0 : index
    %106 = vector.load %arg8[%c0_67, %c0_68] : memref<32x128xf32, #tpu.memory_space<vmem>>, vector<32x128xf32>
    tpu.vector_store %arg8[%c0_67, %c0_68], %105 {strides = array<i32>} : memref<32x128xf32, #tpu.memory_space<vmem>>, vector<32x128xf32>,
    return
  }
}

</mosaic_0001>

<llo_original>
// kernel: conv_block.1
$region0: #{conv_block.1}
  #allocation0 [shape = 'u32[]', space=smem, size = 0x4, offset = 0x4, fixed_abs, tag = 'smem constant byte address 0x4 - core index']
  #allocation1 [shape = 'u32[144,128]{1,0:T(1,128)}', space=vmem, size = 0x12000, scoped, tag = 'internal scratch']
  #allocation2 [shape = 'f32[36,128]{1,0:T(8,128)}', space=vmem, size = 0x5000, scoped, tag = 'scratch operand']
  #allocation3 [shape = 'f32[36,256]{1,0:T(8,128)}', space=vmem, size = 0xa000, scoped, tag = 'scratch operand']
  %s0 = inlined_call_operand.vmem [shape: f32[32,64], index: 0, kind: input, shape index: {}]
  %s1 = inlined_call_operand.vmem [shape: f32[384,128], index: 1, kind: input, shape index: {}]
  %s2 = inlined_call_operand.vmem [shape: f32[1,8], index: 2, kind: input, shape index: {}]
  %s3 = inlined_call_operand.vmem [shape: f32[1,8], index: 3, kind: input, shape index: {}]
  %s4 = inlined_call_operand.vmem [shape: f32[768,128], index: 4, kind: input, shape index: {}]
  %s5 = inlined_call_operand.vmem [shape: f32[1,8], index: 5, kind: input, shape index: {}]
  %s6 = inlined_call_operand.vmem [shape: f32[1,8], index: 6, kind: input, shape index: {}]
  %s7 = inlined_call_operand.vmem [shape: f32[128,8], index: 7, kind: input, shape index: {}]
  %s8 = inlined_call_operand.vmem [shape: f32[32,128], index: 8, kind: output, shape index: {}]
  %s9 = sld [smem:[#allocation0]]
  $region42: #{conv_block.1} parent=0
    _
  %s11 = ssub.s32 1, %s9
  %s12 = scalar_select 0, %s11, %s9
  // Predicated region
  $region2: #{conv_block.1} parent=0 // pred_check
    _
  $region3: #{conv_block.1} parent=0 // pred_check_branch
    %14 = sbr.rel (0) target = $region5
  $region4: #{conv_block.1} parent=0 // pred_region
    _
  $region5: #{conv_block.1} parent=0 // pred_fallthru
    _
  // Predicated region
  $region6: #{conv_block.1} parent=0 // pred_check
    _
  $region7: #{conv_block.1} parent=0 // pred_check_branch
    %16 = sbr.rel (0) target = $region9
  $region8: #{conv_block.1} parent=0 // pred_region
    _
  $region9: #{conv_block.1} parent=0 // pred_fallthru
    _
  // Predicated region
  $region10: #{conv_block.1} parent=0 // pred_check
    _
  $region11: #{conv_block.1} parent=0 // pred_check_branch
    %18 = sbr.rel (0) target = $region13
  $region12: #{conv_block.1} parent=0 // pred_region
    _
  $region13: #{conv_block.1} parent=0 // pred_fallthru
    _
  // Predicated region
  $region14: #{conv_block.1} parent=0 // pred_check
    _
  $region15: #{conv_block.1} parent=0 // pred_check_branch
    %20 = sbr.rel (0) target = $region17
  $region16: #{conv_block.1} parent=0 // pred_region
    _
  $region17: #{conv_block.1} parent=0 // pred_fallthru
    _
  // Predicated region
  $region18: #{conv_block.1} parent=0 // pred_check
    _
  $region19: #{conv_block.1} parent=0 // pred_check_branch
    %22 = sbr.rel (0) target = $region21
  $region20: #{conv_block.1} parent=0 // pred_region
    _
  $region21: #{conv_block.1} parent=0 // pred_fallthru
    _
  // Predicated region
  $region22: #{conv_block.1} parent=0 // pred_check
    _
  $region23: #{conv_block.1} parent=0 // pred_check_branch
    %24 = sbr.rel (0) target = $region25
  $region24: #{conv_block.1} parent=0 // pred_region
    _
  $region25: #{conv_block.1} parent=0 // pred_fallthru
    _
  // Predicated region
  $region26: #{conv_block.1} parent=0 // pred_check
    _
  $region27: #{conv_block.1} parent=0 // pred_check_branch
    %26 = sbr.rel (0) target = $region29
  $region28: #{conv_block.1} parent=0 // pred_region
    _
  $region29: #{conv_block.1} parent=0 // pred_fallthru
    _
  // Predicated region
  $region30: #{conv_block.1} parent=0 // pred_check
    _
  $region31: #{conv_block.1} parent=0 // pred_check_branch
    %28 = sbr.rel (0) target = $region33
  $region32: #{conv_block.1} parent=0 // pred_region
    _
  $region33: #{conv_block.1} parent=0 // pred_fallthru
    _
  %v29 = vld [vmem:[%s7] sm:$0xff]
  %v30 = vld [vmem:[%s7 + $0x8] sm:$0xff]
  %v31 = vld [vmem:[%s7 + $0x10] sm:$0xff]
  %v32 = vld [vmem:[%s7 + $0x18] sm:$0xff]
  %v33 = vld [vmem:[%s7 + $0x20] sm:$0xff]
  %v34 = vld [vmem:[%s7 + $0x28] sm:$0xff]
  %v35 = vld [vmem:[%s7 + $0x30] sm:$0xff]
  %v36 = vld [vmem:[%s7 + $0x38] sm:$0xff]
  %v37 = vld [vmem:[%s7 + $0x40] sm:$0xff]
  %v38 = vld [vmem:[%s7 + $0x48] sm:$0xff]
  %v39 = vld [vmem:[%s7 + $0x50] sm:$0xff]
  %v40 = vld [vmem:[%s7 + $0x58] sm:$0xff]
  %v41 = vld [vmem:[%s7 + $0x60] sm:$0xff]
  %v42 = vld [vmem:[%s7 + $0x68] sm:$0xff]
  %v43 = vld [vmem:[%s7 + $0x70] sm:$0xff]
  %v44 = vld [vmem:[%s7 + $0x78] sm:$0xff]
  %v45 = vld [vmem:[%s0] sm:$0xff]
  %v46 = vld [vmem:[%s0 + $0x8] sm:$0xff]
  %v47 = vld [vmem:[%s0 + $0x10] sm:$0xff]
  %v48 = vld [vmem:[%s0 + $0x18] sm:$0xff]
  %49 = vst [vmem:[#allocation2] sm:$0xff] 0.0
  %50 = vst [vmem:[#allocation2 + $0x8] sm:$0xff] 0.0
  %51 = vst [vmem:[#allocation2 + $0x10] sm:$0xff] 0.0
  %52 = vst [vmem:[#allocation2 + $0x18] sm:$0xff] 0.0
  %53 = vst [vmem:[#allocation2 + $0x20] sm:$0xf] 0.0
  %56 = vrot.lane.b32.xlu0 %v45, 4
  %v57 = vpop.permute.xlu0 %56
  %58 = vrot.lane.b32.xlu0 %v46, 4
  %v59 = vpop.permute.xlu0 %58
  %vm62 = vcmask 556064
  %63 = vst.msk [vmem:[#allocation2 + $0x1] sm:$0xff] %vm62, %v57
  %64 = vst.msk [vmem:[#allocation2 + $0x9] sm:$0xff] %vm62, %v59
  %67 = vrot.lane.b32.xlu0 %v47, 4
  %v68 = vpop.permute.xlu0 %67
  %69 = vrot.lane.b32.xlu0 %v48, 4
  %v70 = vpop.permute.xlu0 %69
  %73 = vst.msk [vmem:[#allocation2 + $0x13] sm:$0xff] %vm62, %v68
  %74 = vst.msk [vmem:[#allocation2 + $0x1b] sm:$0xff] %vm62, %v70
  %v75 = vld [vmem:[#allocation2] sm:$0xff]
  %v76 = vld [vmem:[#allocation2 + $0x8] sm:$0xff]
  %v77 = vld [vmem:[#allocation2 + $0x12] sm:$0xff]
  %v78 = vld [vmem:[#allocation2 + $0x1a] sm:$0xff]
  %v79 = vld [vmem:[#allocation2 + $0x1] sm:$0xff]
  %v80 = vld [vmem:[#allocation2 + $0x9] sm:$0xff]
  %v81 = vld [vmem:[#allocation2 + $0x13] sm:$0xff]
  %v82 = vld [vmem:[#allocation2 + $0x1b] sm:$0xff]
  %v83 = vld [vmem:[#allocation2 + $0x2] sm:$0xff]
  %v84 = vld [vmem:[#allocation2 + $0xa] sm:$0xff]
  %v85 = vld [vmem:[#allocation2 + $0x14] sm:$0xff]
  %v86 = vld [vmem:[#allocation2 + $0x1c] sm:$0xff]
  %v87 = vld [vmem:[%s1] sm:$0xff]
  %v88 = vld [vmem:[%s1 + $0x8] sm:$0xff]
  %v89 = vld [vmem:[%s1 + $0x10] sm:$0xff]
  %v90 = vld [vmem:[%s1 + $0x18] sm:$0xff]
  %v91 = vld [vmem:[%s1 + $0x20] sm:$0xff]
  %v92 = vld [vmem:[%s1 + $0x28] sm:$0xff]
  %v93 = vld [vmem:[%s1 + $0x30] sm:$0xff]
  %v94 = vld [vmem:[%s1 + $0x38] sm:$0xff]
  %v95 = vld [vmem:[%s1 + $0x40] sm:$0xff]
  %v96 = vld [vmem:[%s1 + $0x48] sm:$0xff]
  %v97 = vld [vmem:[%s1 + $0x50] sm:$0xff]
  %v98 = vld [vmem:[%s1 + $0x58] sm:$0xff]
  %v99 = vld [vmem:[%s1 + $0x60] sm:$0xff]
  %v100 = vld [vmem:[%s1 + $0x68] sm:$0xff]
  %v101 = vld [vmem:[%s1 + $0x70] sm:$0xff]
  %v102 = vld [vmem:[%s1 + $0x78] sm:$0xff]
  %v103 = vld [vmem:[%s1 + $0x80] sm:$0xff]
  %v104 = vld [vmem:[%s1 + $0x88] sm:$0xff]
  %v105 = vld [vmem:[%s1 + $0x90] sm:$0xff]
  %v106 = vld [vmem:[%s1 + $0x98] sm:$0xff]
  %v107 = vld [vmem:[%s1 + $0xa0] sm:$0xff]
  %v108 = vld [vmem:[%s1 + $0xa8] sm:$0xff]
  %v109 = vld [vmem:[%s1 + $0xb0] sm:$0xff]
  %v110 = vld [vmem:[%s1 + $0xb8] sm:$0xff]
  %v111 = vld [vmem:[%s1 + $0xc0] sm:$0xff]
  %v112 = vld [vmem:[%s1 + $0xc8] sm:$0xff]
  %v113 = vld [vmem:[%s1 + $0xd0] sm:$0xff]
  %v114 = vld [vmem:[%s1 + $0xd8] sm:$0xff]
  %v115 = vld [vmem:[%s1 + $0xe0] sm:$0xff]
  %v116 = vld [vmem:[%s1 + $0xe8] sm:$0xff]
  %v117 = vld [vmem:[%s1 + $0xf0] sm:$0xff]
  %v118 = vld [vmem:[%s1 + $0xf8] sm:$0xff]
  %v119 = vld [vmem:[%s1 + $0x100] sm:$0xff]
  %v120 = vld [vmem:[%s1 + $0x108] sm:$0xff]
  %v121 = vld [vmem:[%s1 + $0x110] sm:$0xff]
  %v122 = vld [vmem:[%s1 + $0x118] sm:$0xff]
  %v123 = vld [vmem:[%s1 + $0x120] sm:$0xff]
  %v124 = vld [vmem:[%s1 + $0x128] sm:$0xff]
  %v125 = vld [vmem:[%s1 + $0x130] sm:$0xff]
  %v126 = vld [vmem:[%s1 + $0x138] sm:$0xff]
  %v127 = vld [vmem:[%s1 + $0x140] sm:$0xff]
  %v128 = vld [vmem:[%s1 + $0x148] sm:$0xff]
  %v129 = vld [vmem:[%s1 + $0x150] sm:$0xff]
  %v130 = vld [vmem:[%s1 + $0x158] sm:$0xff]
  %v131 = vld [vmem:[%s1 + $0x160] sm:$0xff]
  %v132 = vld [vmem:[%s1 + $0x168] sm:$0xff]
  %v133 = vld [vmem:[%s1 + $0x170] sm:$0xff]
  %v134 = vld [vmem:[%s1 + $0x178] sm:$0xff]
  %135 = vmatprep.subr.mxu0 0.0
  %136 = vmatpush1.msra.mxu0 %v102
  %137 = vmatprep.subr.mxu0 0.0
  %138 = vmatpush1.msra.mxu0 %v101
  %139 = vmatprep.subr.mxu0 0.0
  %140 = vmatpush1.msra.mxu0 %v100
  %141 = vmatprep.subr.mxu0 0.0
  %142 = vmatpush1.msra.mxu0 %v99
  %143 = vmatprep.subr.mxu0 0.0
  %144 = vmatpush1.msra.mxu0 %v98
  %145 = vmatprep.subr.mxu0 0.0
  %146 = vmatpush1.msra.mxu0 %v97
  %147 = vmatprep.subr.mxu0 0.0
  %148 = vmatpush1.msra.mxu0 %v96
  %149 = vmatprep.subr.mxu0 0.0
  %150 = vmatpush1.msra.mxu0 %v95
  %151 = vmatprep.subr.mxu0 0.0
  %152 = vmatpush1.msra.mxu0 %v94
  %153 = vmatprep.subr.mxu0 0.0
  %154 = vmatpush1.msra.mxu0 %v93
  %155 = vmatprep.subr.mxu0 0.0
  %156 = vmatpush1.msra.mxu0 %v92
  %157 = vmatprep.subr.mxu0 0.0
  %158 = vmatpush1.msra.mxu0 %v91
  %159 = vmatprep.subr.mxu0 0.0
  %160 = vmatpush1.msra.mxu0 %v90
  %161 = vmatprep.subr.mxu0 0.0
  %162 = vmatpush1.msra.mxu0 %v89
  %163 = vmatprep.subr.mxu0 0.0
  %164 = vmatpush1.msra.mxu0 %v88
  %165 = vmatprep.subr.mxu0 0.0
  %166 = vmatpush1.msra.mxu0 %v87
  %167 = vmatprep.subr.mxu0 0.0
  %168 = vmatpush2.msra.mxu0 %v118
  %169 = vmatprep.subr.mxu0 0.0
  %170 = vmatpush2.msra.mxu0 %v117
  %171 = vmatprep.subr.mxu0 0.0
  %172 = vmatpush2.msra.mxu0 %v116
  %173 = vmatprep.subr.mxu0 0.0
  %174 = vmatpush2.msra.mxu0 %v115
  %175 = vmatprep.subr.mxu0 0.0
  %176 = vmatpush2.msra.mxu0 %v114
  %177 = vmatprep.subr.mxu0 0.0
  %178 = vmatpush2.msra.mxu0 %v113
  %179 = vmatprep.subr.mxu0 0.0
  %180 = vmatpush2.msra.mxu0 %v112
  %181 = vmatprep.subr.mxu0 0.0
  %182 = vmatpush2.msra.mxu0 %v111
  %183 = vmatprep.subr.mxu0 0.0
  %184 = vmatpush2.msra.mxu0 %v110
  %185 = vmatprep.subr.mxu0 0.0
  %186 = vmatpush2.msra.mxu0 %v109
  %187 = vmatprep.subr.mxu0 0.0
  %188 = vmatpush2.msra.mxu0 %v108
  %189 = vmatprep.subr.mxu0 0.0
  %190 = vmatpush2.msra.mxu0 %v107
  %191 = vmatprep.subr.mxu0 0.0
  %192 = vmatpush2.msra.mxu0 %v106
  %193 = vmatprep.subr.mxu0 0.0
  %194 = vmatpush2.msra.mxu0 %v105
  %195 = vmatprep.subr.mxu0 0.0
  %196 = vmatpush2.msra.mxu0 %v104
  %197 = vmatprep.subr.mxu0 0.0
  %198 = vmatpush2.msra.mxu0 %v103
  %199 = vmatprep.mubr.f32.mxu0 %v79
  %200 = vmatmul.mubr.f32.gmra.mxu0 %v75
  %v201 = vpop.f32.mrf.mxu0
  %v202 = vadd.f32 0.0, %v201
  %v203 = vpop.f32.mrf.mxu0
  %204 = vmatprep.mubr.f32.mxu0 %v80
  %205 = vmatmul.mubr.f32.gmra.mxu0 %v76
  %v206 = vpop.f32.mrf.mxu0
  %v207 = vadd.f32 0.0, %v206
  %v208 = vpop.f32.mrf.mxu0
  %209 = vmatprep.mubr.f32.mxu0 %v81
  %210 = vmatmul.mubr.f32.gmra.mxu0 %v77
  %v211 = vpop.f32.mrf.mxu0
  %v212 = vadd.f32 0.0, %v211
  %v213 = vpop.f32.mrf.mxu0
  %214 = vmatprep.mubr.f32.mxu0 %v82
  %215 = vmatmul.mubr.f32.gmra.mxu0 %v78
  %v216 = vpop.f32.mrf.mxu0
  %v217 = vadd.f32 0.0, %v216
  %v218 = vpop.f32.mrf.mxu0
  %219 = vdwg.mxu0
  %220 = vmatprep.subr.mxu0 0.0
  %221 = vmatpush1.msra.mxu0 %v134
  %222 = vmatprep.subr.mxu0 0.0
  %223 = vmatpush1.msra.mxu0 %v133
  %224 = vmatprep.subr.mxu0 0.0
  %225 = vmatpush1.msra.mxu0 %v132
  %226 = vmatprep.subr.mxu0 0.0
  %227 = vmatpush1.msra.mxu0 %v131
  %228 = vmatprep.subr.mxu0 0.0
  %229 = vmatpush1.msra.mxu0 %v130
  %230 = vmatprep.subr.mxu0 0.0
  %231 = vmatpush1.msra.mxu0 %v129
  %232 = vmatprep.subr.mxu0 0.0
  %233 = vmatpush1.msra.mxu0 %v128
  %234 = vmatprep.subr.mxu0 0.0
  %235 = vmatpush1.msra.mxu0 %v127
  %236 = vmatprep.subr.mxu0 0.0
  %237 = vmatpush1.msra.mxu0 %v126
  %238 = vmatprep.subr.mxu0 0.0
  %239 = vmatpush1.msra.mxu0 %v125
  %240 = vmatprep.subr.mxu0 0.0
  %241 = vmatpush1.msra.mxu0 %v124
  %242 = vmatprep.subr.mxu0 0.0
  %243 = vmatpush1.msra.mxu0 %v123
  %244 = vmatprep.subr.mxu0 0.0
  %245 = vmatpush1.msra.mxu0 %v122
  %246 = vmatprep.subr.mxu0 0.0
  %247 = vmatpush1.msra.mxu0 %v121
  %248 = vmatprep.subr.mxu0 0.0
  %249 = vmatpush1.msra.mxu0 %v120
  %250 = vmatprep.subr.mxu0 0.0
  %251 = vmatpush1.msra.mxu0 %v119
  %252 = vmatprep.subr.mxu0 0.0
  %253 = vmatpush2.msra.mxu0 0.0
  %254 = vmatprep.subr.mxu0 0.0
  %255 = vmatpush2.msra.mxu0 0.0
  %256 = vmatprep.subr.mxu0 0.0
  %257 = vmatpush2.msra.mxu0 0.0
  %258 = vmatprep.subr.mxu0 0.0
  %259 = vmatpush2.msra.mxu0 0.0
  %260 = vmatprep.subr.mxu0 0.0
  %261 = vmatpush2.msra.mxu0 0.0
  %262 = vmatprep.subr.mxu0 0.0
  %263 = vmatpush2.msra.mxu0 0.0
  %264 = vmatprep.subr.mxu0 0.0
  %265 = vmatpush2.msra.mxu0 0.0
  %266 = vmatprep.subr.mxu0 0.0
  %267 = vmatpush2.msra.mxu0 0.0
  %268 = vmatprep.subr.mxu0 0.0
  %269 = vmatpush2.msra.mxu0 0.0
  %270 = vmatprep.subr.mxu0 0.0
  %271 = vmatpush2.msra.mxu0 0.0
  %272 = vmatprep.subr.mxu0 0.0
  %273 = vmatpush2.msra.mxu0 0.0
  %274 = vmatprep.subr.mxu0 0.0
  %275 = vmatpush2.msra.mxu0 0.0
  %276 = vmatprep.subr.mxu0 0.0
  %277 = vmatpush2.msra.mxu0 0.0
  %278 = vmatprep.subr.mxu0 0.0
  %279 = vmatpush2.msra.mxu0 0.0
  %280 = vmatprep.subr.mxu0 0.0
  %281 = vmatpush2.msra.mxu0 0.0
  %282 = vmatprep.subr.mxu0 0.0
  %283 = vmatpush2.msra.mxu0 0.0
  %284 = vmatprep.mubr.f32.mxu0 0.0
  %285 = vmatmul.mubr.f32.gmra.mxu0 %v83
  %v286 = vpop.f32.mrf.mxu0
  %v287 = vadd.f32 %v202, %v286
  %v288 = vpop.f32.mrf.mxu0
  %289 = vmatprep.mubr.f32.mxu0 0.0
  %290 = vmatmul.mubr.f32.gmra.mxu0 %v84
  %v291 = vpop.f32.mrf.mxu0
  %v292 = vadd.f32 %v207, %v291
  %v293 = vpop.f32.mrf.mxu0
  %294 = vmatprep.mubr.f32.mxu0 0.0
  %295 = vmatmul.mubr.f32.gmra.mxu0 %v85
  %v296 = vpop.f32.mrf.mxu0
  %v297 = vadd.f32 %v212, %v296
  %v298 = vpop.f32.mrf.mxu0
  %299 = vmatprep.mubr.f32.mxu0 0.0
  %300 = vmatmul.mubr.f32.gmra.mxu0 %v86
  %v301 = vpop.f32.mrf.mxu0
  %v302 = vadd.f32 %v217, %v301
  %v303 = vpop.f32.mrf.mxu0
  %304 = vdwg.mxu0
  %v305 = vld [vmem:[%s2] sm:$0x1]
  %v306 = vld [vmem:[%s3] sm:$0x1]
  %307 = vmatprep.subr.mxu0 0.0
  %308 = vmatpush1.msra.mxu0 %v44
  %309 = vmatprep.subr.mxu0 0.0
  %310 = vmatpush1.msra.mxu0 %v43
  %311 = vmatprep.subr.mxu0 0.0
  %312 = vmatpush1.msra.mxu0 %v42
  %313 = vmatprep.subr.mxu0 0.0
  %314 = vmatpush1.msra.mxu0 %v41
  %315 = vmatprep.subr.mxu0 0.0
  %316 = vmatpush1.msra.mxu0 %v40
  %317 = vmatprep.subr.mxu0 0.0
  %318 = vmatpush1.msra.mxu0 %v39
  %319 = vmatprep.subr.mxu0 0.0
  %320 = vmatpush1.msra.mxu0 %v38
  %321 = vmatprep.subr.mxu0 0.0
  %322 = vmatpush1.msra.mxu0 %v37
  %323 = vmatprep.subr.mxu0 0.0
  %324 = vmatpush1.msra.mxu0 %v36
  %325 = vmatprep.subr.mxu0 0.0
  %326 = vmatpush1.msra.mxu0 %v35
  %327 = vmatprep.subr.mxu0 0.0
  %328 = vmatpush1.msra.mxu0 %v34
  %329 = vmatprep.subr.mxu0 0.0
  %330 = vmatpush1.msra.mxu0 %v33
  %331 = vmatprep.subr.mxu0 0.0
  %332 = vmatpush1.msra.mxu0 %v32
  %333 = vmatprep.subr.mxu0 0.0
  %334 = vmatpush1.msra.mxu0 %v31
  %335 = vmatprep.subr.mxu0 0.0
  %336 = vmatpush1.msra.mxu0 %v30
  %337 = vmatprep.subr.mxu0 0.0
  %338 = vmatpush1.msra.mxu0 %v29
  %339 = vmatprep.subr.mxu0 0.0
  %340 = vmatpush2.msra.mxu0 0.0
  %341 = vmatprep.subr.mxu0 0.0
  %342 = vmatpush2.msra.mxu0 0.0
  %343 = vmatprep.subr.mxu0 0.0
  %344 = vmatpush2.msra.mxu0 0.0
  %345 = vmatprep.subr.mxu0 0.0
  %346 = vmatpush2.msra.mxu0 0.0
  %347 = vmatprep.subr.mxu0 0.0
  %348 = vmatpush2.msra.mxu0 0.0
  %349 = vmatprep.subr.mxu0 0.0
  %350 = vmatpush2.msra.mxu0 0.0
  %351 = vmatprep.subr.mxu0 0.0
  %352 = vmatpush2.msra.mxu0 0.0
  %353 = vmatprep.subr.mxu0 0.0
  %354 = vmatpush2.msra.mxu0 0.0
  %355 = vmatprep.subr.mxu0 0.0
  %356 = vmatpush2.msra.mxu0 0.0
  %357 = vmatprep.subr.mxu0 0.0
  %358 = vmatpush2.msra.mxu0 0.0
  %359 = vmatprep.subr.mxu0 0.0
  %360 = vmatpush2.msra.mxu0 0.0
  %361 = vmatprep.subr.mxu0 0.0
  %362 = vmatpush2.msra.mxu0 0.0
  %363 = vmatprep.subr.mxu0 0.0
  %364 = vmatpush2.msra.mxu0 0.0
  %365 = vmatprep.subr.mxu0 0.0
  %366 = vmatpush2.msra.mxu0 0.0
  %367 = vmatprep.subr.mxu0 0.0
  %368 = vmatpush2.msra.mxu0 0.0
  %369 = vmatprep.subr.mxu0 0.0
  %370 = vmatpush2.msra.mxu0 0.0
  %371 = vmatprep.mubr.f32.mxu0 0.0
  %372 = vmatmul.mubr.f32.gmra.mxu0 %v287
  %v373 = vpop.f32.mrf.mxu0
  %v374 = vadd.f32 0.0, %v373
  %v375 = vpop.f32.mrf.mxu0
  %376 = vmatprep.mubr.f32.mxu0 0.0
  %377 = vmatmul.mubr.f32.gmra.mxu0 %v292
  %v378 = vpop.f32.mrf.mxu0
  %v379 = vadd.f32 0.0, %v378
  %v380 = vpop.f32.mrf.mxu0
  %381 = vmatprep.mubr.f32.mxu0 0.0
  %382 = vmatmul.mubr.f32.gmra.mxu0 %v297
  %v383 = vpop.f32.mrf.mxu0
  %v384 = vadd.f32 0.0, %v383
  %v385 = vpop.f32.mrf.mxu0
  %386 = vmatprep.mubr.f32.mxu0 0.0
  %387 = vmatmul.mubr.f32.gmra.mxu0 %v302
  %v388 = vpop.f32.mrf.mxu0
  %v389 = vadd.f32 0.0, %v388
  %v390 = vpop.f32.mrf.mxu0
  %391 = vdwg.mxu0
  %vm392 = vcmask 64512
  %v393 = vsel %vm392, %v374, 0.0
  %v394 = vsel %vm392, %v379, 0.0
  %v395 = vadd.f32 %v393, %v394
  %v396 = vsel %vm392, %v384, 0.0
  %v397 = vadd.f32 %v395, %v396
  %v398 = vsel %vm392, %v389, 0.0
  %v399 = vadd.f32 %v397, %v398
  %v400 = vrot.slane %v399, 4
  %v401 = vadd.f32 %v399, %v400
  %v402 = vrot.slane %v401, 2
  %v403 = vadd.f32 %v401, %v402
  %v404 = vrot.slane %v403, 1
  %v405 = vadd.f32 %v403, %v404
  %v406 = vmul.f32 %v287, %v287
  %v407 = vmul.f32 %v292, %v292
  %v408 = vmul.f32 %v297, %v297
  %v409 = vmul.f32 %v302, %v302
  %410 = vmatprep.subr.mxu0 0.0
  %411 = vmatpush1.msra.mxu0 %v44
  %412 = vmatprep.subr.mxu0 0.0
  %413 = vmatpush1.msra.mxu0 %v43
  %414 = vmatprep.subr.mxu0 0.0
  %415 = vmatpush1.msra.mxu0 %v42
  %416 = vmatprep.subr.mxu0 0.0
  %417 = vmatpush1.msra.mxu0 %v41
  %418 = vmatprep.subr.mxu0 0.0
  %419 = vmatpush1.msra.mxu0 %v40
  %420 = vmatprep.subr.mxu0 0.0
  %421 = vmatpush1.msra.mxu0 %v39
  %422 = vmatprep.subr.mxu0 0.0
  %423 = vmatpush1.msra.mxu0 %v38
  %424 = vmatprep.subr.mxu0 0.0
  %425 = vmatpush1.msra.mxu0 %v37
  %426 = vmatprep.subr.mxu0 0.0
  %427 = vmatpush1.msra.mxu0 %v36
  %428 = vmatprep.subr.mxu0 0.0
  %429 = vmatpush1.msra.mxu0 %v35
  %430 = vmatprep.subr.mxu0 0.0
  %431 = vmatpush1.msra.mxu0 %v34
  %432 = vmatprep.subr.mxu0 0.0
  %433 = vmatpush1.msra.mxu0 %v33
  %434 = vmatprep.subr.mxu0 0.0
  %435 = vmatpush1.msra.mxu0 %v32
  %436 = vmatprep.subr.mxu0 0.0
  %437 = vmatpush1.msra.mxu0 %v31
  %438 = vmatprep.subr.mxu0 0.0
  %439 = vmatpush1.msra.mxu0 %v30
  %440 = vmatprep.subr.mxu0 0.0
  %441 = vmatpush1.msra.mxu0 %v29
  %442 = vmatprep.subr.mxu0 0.0
  %443 = vmatpush2.msra.mxu0 0.0
  %444 = vmatprep.subr.mxu0 0.0
  %445 = vmatpush2.msra.mxu0 0.0
  %446 = vmatprep.subr.mxu0 0.0
  %447 = vmatpush2.msra.mxu0 0.0
  %448 = vmatprep.subr.mxu0 0.0
  %449 = vmatpush2.msra.mxu0 0.0
  %450 = vmatprep.subr.mxu0 0.0
  %451 = vmatpush2.msra.mxu0 0.0
  %452 = vmatprep.subr.mxu0 0.0
  %453 = vmatpush2.msra.mxu0 0.0
  %454 = vmatprep.subr.mxu0 0.0
  %455 = vmatpush2.msra.mxu0 0.0
  %456 = vmatprep.subr.mxu0 0.0
  %457 = vmatpush2.msra.mxu0 0.0
  %458 = vmatprep.subr.mxu0 0.0
  %459 = vmatpush2.msra.mxu0 0.0
  %460 = vmatprep.subr.mxu0 0.0
  %461 = vmatpush2.msra.mxu0 0.0
  %462 = vmatprep.subr.mxu0 0.0
  %463 = vmatpush2.msra.mxu0 0.0
  %464 = vmatprep.subr.mxu0 0.0
  %465 = vmatpush2.msra.mxu0 0.0
  %466 = vmatprep.subr.mxu0 0.0
  %467 = vmatpush2.msra.mxu0 0.0
  %468 = vmatprep.subr.mxu0 0.0
  %469 = vmatpush2.msra.mxu0 0.0
  %470 = vmatprep.subr.mxu0 0.0
  %471 = vmatpush2.msra.mxu0 0.0
  %472 = vmatprep.subr.mxu0 0.0
  %473 = vmatpush2.msra.mxu0 0.0
  %474 = vmatprep.mubr.f32.mxu0 0.0
  %475 = vmatmul.mubr.f32.gmra.mxu0 %v406
  %v476 = vpop.f32.mrf.mxu0
  %v477 = vadd.f32 0.0, %v476
  %v478 = vpop.f32.mrf.mxu0
  %479 = vmatprep.mubr.f32.mxu0 0.0
  %480 = vmatmul.mubr.f32.gmra.mxu0 %v407
  %v481 = vpop.f32.mrf.mxu0
  %v482 = vadd.f32 0.0, %v481
  %v483 = vpop.f32.mrf.mxu0
  %484 = vmatprep.mubr.f32.mxu0 0.0
  %485 = vmatmul.mubr.f32.gmra.mxu0 %v408
  %v486 = vpop.f32.mrf.mxu0
  %v487 = vadd.f32 0.0, %v486
  %v488 = vpop.f32.mrf.mxu0
  %489 = vmatprep.mubr.f32.mxu0 0.0
  %490 = vmatmul.mubr.f32.gmra.mxu0 %v409
  %v491 = vpop.f32.mrf.mxu0
  %v492 = vadd.f32 0.0, %v491
  %v493 = vpop.f32.mrf.mxu0
  %494 = vdwg.mxu0
  %v495 = vsel %vm392, %v477, 0.0
  %v496 = vsel %vm392, %v482, 0.0
  %v497 = vadd.f32 %v495, %v496
  %v498 = vsel %vm392, %v487, 0.0
  %v499 = vadd.f32 %v497, %v498
  %v500 = vsel %vm392, %v492, 0.0
  %v501 = vadd.f32 %v499, %v500
  %v502 = vrot.slane %v501, 4
  %v503 = vadd.f32 %v501, %v502
  %v504 = vrot.slane %v503, 2
  %v505 = vadd.f32 %v503, %v504
  %v506 = vrot.slane %v505, 1
  %v507 = vadd.f32 %v505, %v506
  %v508 = vmul.f32 %v405, 0.001953125
  %v509 = vmul.f32 %v507, 0.001953125
  %v510 = vmul.f32 %v508, %v508
  %v511 = vsub.f32 %v509, %v510
  %v512 = vmax.f32 %v511, 0.0
  %v513 = vadd.f32 %v512, 1e-05
  %v514 = vrsqrt.pop %v513
  %v515 = vmul.f32 %v305, %v514
  %v516 = vmul.f32 %v508, %v515
  %v517 = vsub.f32 %v306, %v516
  %v519 = vlaneseq
  %v520 = vshrl.u32 %v519, 7
  %v521 = vsub.s32 0, %v520
  %v522 = vrot.slane %v515, %v521
  %523 = vrot.lane.b32.xlu0 %v522, 8
  %v524 = vpop.permute.xlu0 %523
  %526 = vrot.lane.b32.xlu0 %v522, 16
  %v527 = vpop.permute.xlu0 %526
  %529 = vrot.lane.b32.xlu0 %v522, 24
  %v530 = vpop.permute.xlu0 %529
  %532 = vrot.lane.b32.xlu0 %v522, 32
  %v533 = vpop.permute.xlu0 %532
  %535 = vrot.lane.b32.xlu0 %v522, 40
  %v536 = vpop.permute.xlu0 %535
  %538 = vrot.lane.b32.xlu0 %v522, 48
  %v539 = vpop.permute.xlu0 %538
  %541 = vrot.lane.b32.xlu0 %v522, 56
  %v542 = vpop.permute.xlu0 %541
  %544 = vrot.lane.b32.xlu0 %v522, 64
  %v545 = vpop.permute.xlu0 %544
  %547 = vrot.lane.b32.xlu0 %v522, 72
  %v548 = vpop.permute.xlu0 %547
  %550 = vrot.lane.b32.xlu0 %v522, 80
  %v551 = vpop.permute.xlu0 %550
  %553 = vrot.lane.b32.xlu0 %v522, 88
  %v554 = vpop.permute.xlu0 %553
  %556 = vrot.lane.b32.xlu0 %v522, 96
  %v557 = vpop.permute.xlu0 %556
  %559 = vrot.lane.b32.xlu0 %v522, 104
  %v560 = vpop.permute.xlu0 %559
  %562 = vrot.lane.b32.xlu0 %v522, 112
  %v563 = vpop.permute.xlu0 %562
  %565 = vrot.lane.b32.xlu0 %v522, 120
  %v566 = vpop.permute.xlu0 %565
  %v568 = vsel %vm392, %v515, %v524
  %vm569 = vcmask 130048
  %v570 = vsel %vm569, %v568, %v527
  %vm571 = vcmask 195584
  %v572 = vsel %vm571, %v570, %v530
  %vm573 = vcmask 261120
  %v574 = vsel %vm573, %v572, %v533
  %vm575 = vcmask 326656
  %v576 = vsel %vm575, %v574, %v536
  %vm577 = vcmask 392192
  %v578 = vsel %vm577, %v576, %v539
  %vm579 = vcmask 457728
  %v580 = vsel %vm579, %v578, %v542
  %vm581 = vcmask 523264
  %v582 = vsel %vm581, %v580, %v545
  %vm583 = vcmask 588800
  %v584 = vsel %vm583, %v582, %v548
  %vm585 = vcmask 654336
  %v586 = vsel %vm585, %v584, %v551
  %vm587 = vcmask 719872
  %v588 = vsel %vm587, %v586, %v554
  %vm589 = vcmask 785408
  %v590 = vsel %vm589, %v588, %v557
  %vm591 = vcmask 850944
  %v592 = vsel %vm591, %v590, %v560
  %vm593 = vcmask 916480
  %v594 = vsel %vm593, %v592, %v563
  %vm595 = vcmask 982016
  %v596 = vsel %vm595, %v594, %v566
  %v597 = vlaneseq
  %v598 = vshrl.u32 %v597, 7
  %v599 = vsub.s32 0, %v598
  %v600 = vrot.slane %v596, %v599
  %v601 = vmul.f32 %v287, %v600
  %v602 = vmul.f32 %v292, %v600
  %v603 = vmul.f32 %v297, %v600
  %v604 = vmul.f32 %v302, %v600
  %v606 = vlaneseq
  %v607 = vshrl.u32 %v606, 7
  %v608 = vsub.s32 0, %v607
  %v609 = vrot.slane %v517, %v608
  %610 = vrot.lane.b32.xlu0 %v609, 8
  %v611 = vpop.permute.xlu0 %610
  %613 = vrot.lane.b32.xlu0 %v609, 16
  %v614 = vpop.permute.xlu0 %613
  %616 = vrot.lane.b32.xlu0 %v609, 24
  %v617 = vpop.permute.xlu0 %616
  %619 = vrot.lane.b32.xlu0 %v609, 32
  %v620 = vpop.permute.xlu0 %619
  %622 = vrot.lane.b32.xlu0 %v609, 40
  %v623 = vpop.permute.xlu0 %622
  %625 = vrot.lane.b32.xlu0 %v609, 48
  %v626 = vpop.permute.xlu0 %625
  %628 = vrot.lane.b32.xlu0 %v609, 56
  %v629 = vpop.permute.xlu0 %628
  %631 = vrot.lane.b32.xlu0 %v609, 64
  %v632 = vpop.permute.xlu0 %631
  %634 = vrot.lane.b32.xlu0 %v609, 72
  %v635 = vpop.permute.xlu0 %634
  %637 = vrot.lane.b32.xlu0 %v609, 80
  %v638 = vpop.permute.xlu0 %637
  %640 = vrot.lane.b32.xlu0 %v609, 88
  %v641 = vpop.permute.xlu0 %640
  %643 = vrot.lane.b32.xlu0 %v609, 96
  %v644 = vpop.permute.xlu0 %643
  %646 = vrot.lane.b32.xlu0 %v609, 104
  %v647 = vpop.permute.xlu0 %646
  %649 = vrot.lane.b32.xlu0 %v609, 112
  %v650 = vpop.permute.xlu0 %649
  %652 = vrot.lane.b32.xlu0 %v609, 120
  %v653 = vpop.permute.xlu0 %652
  %v655 = vsel %vm392, %v517, %v611
  %v656 = vsel %vm569, %v655, %v614
  %v657 = vsel %vm571, %v656, %v617
  %v658 = vsel %vm573, %v657, %v620
  %v659 = vsel %vm575, %v658, %v623
  %v660 = vsel %vm577, %v659, %v626
  %v661 = vsel %vm579, %v660, %v629
  %v662 = vsel %vm581, %v661, %v632
  %v663 = vsel %vm583, %v662, %v635
  %v664 = vsel %vm585, %v663, %v638
  %v665 = vsel %vm587, %v664, %v641
  %v666 = vsel %vm589, %v665, %v644
  %v667 = vsel %vm591, %v666, %v647
  %v668 = vsel %vm593, %v667, %v650
  %v669 = vsel %vm595, %v668, %v653
  %v670 = vlaneseq
  %v671 = vshrl.u32 %v670, 7
  %v672 = vsub.s32 0, %v671
  %v673 = vrot.slane %v669, %v672
  %v674 = vadd.f32 %v601, %v673
  %v675 = vadd.f32 %v602, %v673
  %v676 = vadd.f32 %v603, %v673
  %v677 = vadd.f32 %v604, %v673
  %vm678 = vcmp.gt.f32.partialorder %v674, 0.0
  %vm679 = vcmp.gt.f32.partialorder %v675, 0.0
  %vm680 = vcmp.gt.f32.partialorder %v676, 0.0
  %vm681 = vcmp.gt.f32.partialorder %v677, 0.0
  %v682 = vmul.f32 %v674, 0.05
  %v683 = vmul.f32 %v675, 0.05
  %v684 = vmul.f32 %v676, 0.05
  %v685 = vmul.f32 %v677, 0.05
  %v686 = vsel %vm678, %v674, %v682
  %v687 = vsel %vm679, %v675, %v683
  %v688 = vsel %vm680, %v676, %v684
  %v689 = vsel %vm681, %v677, %v685
  %690 = vst [vmem:[#allocation3] sm:$0xff] 0.0
  %691 = vst [vmem:[#allocation3 + $0x8] sm:$0xff] 0.0
  %692 = vst [vmem:[#allocation3 + $0x10] sm:$0xff] 0.0
  %693 = vst [vmem:[#allocation3 + $0x18] sm:$0xff] 0.0
  %694 = vst [vmem:[#allocation3 + $0x20] sm:$0xff] 0.0
  %695 = vst [vmem:[#allocation3 + $0x28] sm:$0xff] 0.0
  %696 = vst [vmem:[#allocation3 + $0x30] sm:$0xff] 0.0
  %697 = vst [vmem:[#allocation3 + $0x38] sm:$0xff] 0.0
  %698 = vst [vmem:[#allocation3 + $0x40] sm:$0xf] 0.0
  %699 = vst [vmem:[#allocation3 + $0x48] sm:$0xf] 0.0
  %vm702 = vcmask 1040384
  %v703 = vrot.slane %v686, 7
  %v704 = vrot.slane %v687, 7
  %v705 = vsel %vm702, %v703, %v704
  %706 = vrot.lane.b32.xlu0 %v703, 8
  %v707 = vpop.permute.xlu0 %706
  %708 = vrot.lane.b32.xlu0 %v705, 8
  %v709 = vpop.permute.xlu0 %708
  %710 = vrot.lane.b32.xlu0 %v704, 8
  %v711 = vpop.permute.xlu0 %710
  %vm715 = vcmask 1047617
  %716 = vst.msk [vmem:[#allocation3] sm:$0xfe] %vm715, %v707
  %vm717 = vcmask 64513
  %718 = vst.msk [vmem:[#allocation3 + $0x8] sm:$0xfe] %vm717, %v707
  %vm719 = vcmask 1047616
  %720 = vst.msk [vmem:[#allocation3 + $0x10] sm:$0xff] %vm719, %v709
  %721 = vst.msk [vmem:[#allocation3 + $0x18] sm:$0xff] %vm392, %v709
  %vm722 = vcmask 1040448
  %723 = vst.msk [vmem:[#allocation3 + $0x20] sm:$0x1] %vm722, %v711
  %vm724 = vcmask 57344
  %725 = vst.msk [vmem:[#allocation3 + $0x28] sm:$0x1] %vm724, %v711
  %vm728 = vcmask 1042432
  %v729 = vrot.slane %v688, 5
  %v730 = vrot.slane %v689, 5
  %v731 = vsel %vm728, %v729, %v730
  %732 = vrot.lane.b32.xlu0 %v729, 8
  %v733 = vpop.permute.xlu0 %732
  %734 = vrot.lane.b32.xlu0 %v731, 8
  %v735 = vpop.permute.xlu0 %734
  %736 = vrot.lane.b32.xlu0 %v730, 8
  %v737 = vpop.permute.xlu0 %736
  %vm741 = vcmask 1047619
  %742 = vst.msk [vmem:[#allocation3 + $0x20] sm:$0xf8] %vm741, %v733
  %vm743 = vcmask 64515
  %744 = vst.msk [vmem:[#allocation3 + $0x28] sm:$0xf8] %vm743, %v733
  %745 = vst.msk [vmem:[#allocation3 + $0x30] sm:$0xff] %vm719, %v735
  %746 = vst.msk [vmem:[#allocation3 + $0x38] sm:$0xff] %vm392, %v735
  %vm747 = vcmask 1042496
  %748 = vst.msk [vmem:[#allocation3 + $0x40] sm:$0x7] %vm747, %v737
  %vm749 = vcmask 59392
  %750 = vst.msk [vmem:[#allocation3 + $0x48] sm:$0x7] %vm749, %v737
  %v751 = vld [vmem:[#allocation3] sm:$0xff]
  %v752 = vld [vmem:[#allocation3 + $0x8] sm:$0xff]
  %v753 = vld [vmem:[#allocation3 + $0x10] sm:$0xff]
  %v754 = vld [vmem:[#allocation3 + $0x18] sm:$0xff]
  %v755 = vld [vmem:[#allocation3 + $0x20] sm:$0xfc]
  %v756 = vld [vmem:[#allocation3 + $0x28] sm:$0xfc]
  %v757 = vld [vmem:[#allocation3 + $0x30] sm:$0xff]
  %v758 = vld [vmem:[#allocation3 + $0x38] sm:$0xff]
  %v759 = vld [vmem:[#allocation3 + $0x40] sm:$0x3]
  %v760 = vld [vmem:[#allocation3 + $0x48] sm:$0x3]
  %vm767 = vcmask 1045504
  %v768 = vrot.slane %v755, 2
  %v769 = vrot.slane %v757, 2
  %v770 = vsel %vm767, %v768, %v769
  %v771 = vrot.slane %v756, 2
  %v772 = vrot.slane %v758, 2
  %v773 = vsel %vm767, %v771, %v772
  %v774 = vrot.slane %v759, 2
  %v775 = vsel %vm767, %v769, %v774
  %v776 = vrot.slane %v760, 2
  %v777 = vsel %vm767, %v772, %v776
  %v782 = vld [vmem:[#allocation3] sm:$0xfe]
  %v783 = vld [vmem:[#allocation3 + $0x8] sm:$0xfe]
  %v784 = vld [vmem:[#allocation3 + $0x20] sm:$0x1]
  %v785 = vld [vmem:[#allocation3 + $0x28] sm:$0x1]
  %v786 = vld [vmem:[#allocation3 + $0x20] sm:$0xf8]
  %v787 = vld [vmem:[#allocation3 + $0x28] sm:$0xf8]
  %v788 = vld [vmem:[#allocation3 + $0x40] sm:$0x7]
  %v789 = vld [vmem:[#allocation3 + $0x48] sm:$0x7]
  %vm796 = vcmask 1046528
  %v797 = vrot.slane %v782, 1
  %v798 = vrot.slane %v753, 1
  %v799 = vsel %vm796, %v797, %v798
  %v800 = vrot.slane %v783, 1
  %v801 = vrot.slane %v754, 1
  %v802 = vsel %vm796, %v800, %v801
  %v803 = vrot.slane %v784, 1
  %v804 = vsel %vm796, %v798, %v803
  %v805 = vrot.slane %v785, 1
  %v806 = vsel %vm796, %v801, %v805
  %vm815 = vcmask 1044480
  %v816 = vrot.slane %v786, 3
  %v817 = vrot.slane %v757, 3
  %v818 = vsel %vm815, %v816, %v817
  %v819 = vrot.slane %v787, 3
  %v820 = vrot.slane %v758, 3
  %v821 = vsel %vm815, %v819, %v820
  %v822 = vrot.slane %v788, 3
  %v823 = vsel %vm815, %v817, %v822
  %v824 = vrot.slane %v789, 3
  %v825 = vsel %vm815, %v820, %v824
  %v830 = vld [vmem:[#allocation3] sm:$0xfc]
  %v831 = vld [vmem:[#allocation3 + $0x8] sm:$0xfc]
  %v832 = vld [vmem:[#allocation3 + $0x20] sm:$0x3]
  %v833 = vld [vmem:[#allocation3 + $0x28] sm:$0x3]
  %v834 = vld [vmem:[#allocation3 + $0x20] sm:$0xf0]
  %v835 = vld [vmem:[#allocation3 + $0x28] sm:$0xf0]
  %v836 = vld [vmem:[#allocation3 + $0x40] sm:$0xf]
  %v837 = vld [vmem:[#allocation3 + $0x48] sm:$0xf]
  %v842 = vrot.slane %v830, 2
  %v843 = vrot.slane %v753, 2
  %v844 = vsel %vm767, %v842, %v843
  %v845 = vrot.slane %v831, 2
  %v846 = vrot.slane %v754, 2
  %v847 = vsel %vm767, %v845, %v846
  %v848 = vrot.slane %v832, 2
  %v849 = vsel %vm767, %v843, %v848
  %v850 = vrot.slane %v833, 2
  %v851 = vsel %vm767, %v846, %v850
  %vm860 = vcmask 1043456
  %v861 = vrot.slane %v834, 4
  %v862 = vrot.slane %v757, 4
  %v863 = vsel %vm860, %v861, %v862
  %v864 = vrot.slane %v835, 4
  %v865 = vrot.slane %v758, 4
  %v866 = vsel %vm860, %v864, %v865
  %v867 = vrot.slane %v836, 4
  %v868 = vsel %vm860, %v862, %v867
  %v869 = vrot.slane %v837, 4
  %v870 = vsel %vm860, %v865, %v869
  %v875 = vld [vmem:[%s4] sm:$0xff]
  %v876 = vld [vmem:[%s4 + $0x8] sm:$0xff]
  %v877 = vld [vmem:[%s4 + $0x10] sm:$0xff]
  %v878 = vld [vmem:[%s4 + $0x18] sm:$0xff]
  %v879 = vld [vmem:[%s4 + $0x20] sm:$0xff]
  %v880 = vld [vmem:[%s4 + $0x28] sm:$0xff]
  %v881 = vld [vmem:[%s4 + $0x30] sm:$0xff]
  %v882 = vld [vmem:[%s4 + $0x38] sm:$0xff]
  %v883 = vld [vmem:[%s4 + $0x40] sm:$0xff]
  %v884 = vld [vmem:[%s4 + $0x48] sm:$0xff]
  %v885 = vld [vmem:[%s4 + $0x50] sm:$0xff]
  %v886 = vld [vmem:[%s4 + $0x58] sm:$0xff]
  %v887 = vld [vmem:[%s4 + $0x60] sm:$0xff]
  %v888 = vld [vmem:[%s4 + $0x68] sm:$0xff]
  %v889 = vld [vmem:[%s4 + $0x70] sm:$0xff]
  %v890 = vld [vmem:[%s4 + $0x78] sm:$0xff]
  %v891 = vld [vmem:[%s4 + $0x80] sm:$0xff]
  %v892 = vld [vmem:[%s4 + $0x88] sm:$0xff]
  %v893 = vld [vmem:[%s4 + $0x90] sm:$0xff]
  %v894 = vld [vmem:[%s4 + $0x98] sm:$0xff]
  %v895 = vld [vmem:[%s4 + $0xa0] sm:$0xff]
  %v896 = vld [vmem:[%s4 + $0xa8] sm:$0xff]
  %v897 = vld [vmem:[%s4 + $0xb0] sm:$0xff]
  %v898 = vld [vmem:[%s4 + $0xb8] sm:$0xff]
  %v899 = vld [vmem:[%s4 + $0xc0] sm:$0xff]
  %v900 = vld [vmem:[%s4 + $0xc8] sm:$0xff]
  %v901 = vld [vmem:[%s4 + $0xd0] sm:$0xff]
  %v902 = vld [vmem:[%s4 + $0xd8] sm:$0xff]
  %v903 = vld [vmem:[%s4 + $0xe0] sm:$0xff]
  %v904 = vld [vmem:[%s4 + $0xe8] sm:$0xff]
  %v905 = vld [vmem:[%s4 + $0xf0] sm:$0xff]
  %v906 = vld [vmem:[%s4 + $0xf8] sm:$0xff]
  %v907 = vld [vmem:[%s4 + $0x100] sm:$0xff]
  %v908 = vld [vmem:[%s4 + $0x108] sm:$0xff]
  %v909 = vld [vmem:[%s4 + $0x110] sm:$0xff]
  %v910 = vld [vmem:[%s4 + $0x118] sm:$0xff]
  %v911 = vld [vmem:[%s4 + $0x120] sm:$0xff]
  %v912 = vld [vmem:[%s4 + $0x128] sm:$0xff]
  %v913 = vld [vmem:[%s4 + $0x130] sm:$0xff]
  %v914 = vld [vmem:[%s4 + $0x138] sm:$0xff]
  %v915 = vld [vmem:[%s4 + $0x140] sm:$0xff]
  %v916 = vld [vmem:[%s4 + $0x148] sm:$0xff]
  %v917 = vld [vmem:[%s4 + $0x150] sm:$0xff]
  %v918 = vld [vmem:[%s4 + $0x158] sm:$0xff]
  %v919 = vld [vmem:[%s4 + $0x160] sm:$0xff]
  %v920 = vld [vmem:[%s4 + $0x168] sm:$0xff]
  %v921 = vld [vmem:[%s4 + $0x170] sm:$0xff]
  %v922 = vld [vmem:[%s4 + $0x178] sm:$0xff]
  %v923 = vld [vmem:[%s4 + $0x180] sm:$0xff]
  %v924 = vld [vmem:[%s4 + $0x188] sm:$0xff]
  %v925 = vld [vmem:[%s4 + $0x190] sm:$0xff]
  %v926 = vld [vmem:[%s4 + $0x198] sm:$0xff]
  %v927 = vld [vmem:[%s4 + $0x1a0] sm:$0xff]
  %v928 = vld [vmem:[%s4 + $0x1a8] sm:$0xff]
  %v929 = vld [vmem:[%s4 + $0x1b0] sm:$0xff]
  %v930 = vld [vmem:[%s4 + $0x1b8] sm:$0xff]
  %v931 = vld [vmem:[%s4 + $0x1c0] sm:$0xff]
  %v932 = vld [vmem:[%s4 + $0x1c8] sm:$0xff]
  %v933 = vld [vmem:[%s4 + $0x1d0] sm:$0xff]
  %v934 = vld [vmem:[%s4 + $0x1d8] sm:$0xff]
  %v935 = vld [vmem:[%s4 + $0x1e0] sm:$0xff]
  %v936 = vld [vmem:[%s4 + $0x1e8] sm:$0xff]
  %v937 = vld [vmem:[%s4 + $0x1f0] sm:$0xff]
  %v938 = vld [vmem:[%s4 + $0x1f8] sm:$0xff]
  %v939 = vld [vmem:[%s4 + $0x200] sm:$0xff]
  %v940 = vld [vmem:[%s4 + $0x208] sm:$0xff]
  %v941 = vld [vmem:[%s4 + $0x210] sm:$0xff]
  %v942 = vld [vmem:[%s4 + $0x218] sm:$0xff]
  %v943 = vld [vmem:[%s4 + $0x220] sm:$0xff]
  %v944 = vld [vmem:[%s4 + $0x228] sm:$0xff]
  %v945 = vld [vmem:[%s4 + $0x230] sm:$0xff]
  %v946 = vld [vmem:[%s4 + $0x238] sm:$0xff]
  %v947 = vld [vmem:[%s4 + $0x240] sm:$0xff]
  %v948 = vld [vmem:[%s4 + $0x248] sm:$0xff]
  %v949 = vld [vmem:[%s4 + $0x250] sm:$0xff]
  %v950 = vld [vmem:[%s4 + $0x258] sm:$0xff]
  %v951 = vld [vmem:[%s4 + $0x260] sm:$0xff]
  %v952 = vld [vmem:[%s4 + $0x268] sm:$0xff]
  %v953 = vld [vmem:[%s4 + $0x270] sm:$0xff]
  %v954 = vld [vmem:[%s4 + $0x278] sm:$0xff]
  %v955 = vld [vmem:[%s4 + $0x280] sm:$0xff]
  %v956 = vld [vmem:[%s4 + $0x288] sm:$0xff]
  %v957 = vld [vmem:[%s4 + $0x290] sm:$0xff]
  %v958 = vld [vmem:[%s4 + $0x298] sm:$0xff]
  %v959 = vld [vmem:[%s4 + $0x2a0] sm:$0xff]
  %v960 = vld [vmem:[%s4 + $0x2a8] sm:$0xff]
  %v961 = vld [vmem:[%s4 + $0x2b0] sm:$0xff]
  %v962 = vld [vmem:[%s4 + $0x2b8] sm:$0xff]
  %v963 = vld [vmem:[%s4 + $0x2c0] sm:$0xff]
  %v964 = vld [vmem:[%s4 + $0x2c8] sm:$0xff]
  %v965 = vld [vmem:[%s4 + $0x2d0] sm:$0xff]
  %v966 = vld [vmem:[%s4 + $0x2d8] sm:$0xff]
  %v967 = vld [vmem:[%s4 + $0x2e0] sm:$0xff]
  %v968 = vld [vmem:[%s4 + $0x2e8] sm:$0xff]
  %v969 = vld [vmem:[%s4 + $0x2f0] sm:$0xff]
  %v970 = vld [vmem:[%s4 + $0x2f8] sm:$0xff]
  %971 = vmatprep.subr.mxu0 0.0
  %972 = vmatpush1.msra.mxu0 %v890
  %973 = vmatprep.subr.mxu0 0.0
  %974 = vmatpush1.msra.mxu0 %v889
  %975 = vmatprep.subr.mxu0 0.0
  %976 = vmatpush1.msra.mxu0 %v888
  %977 = vmatprep.subr.mxu0 0.0
  %978 = vmatpush1.msra.mxu0 %v887
  %979 = vmatprep.subr.mxu0 0.0
  %980 = vmatpush1.msra.mxu0 %v886
  %981 = vmatprep.subr.mxu0 0.0
  %982 = vmatpush1.msra.mxu0 %v885
  %983 = vmatprep.subr.mxu0 0.0
  %984 = vmatpush1.msra.mxu0 %v884
  %985 = vmatprep.subr.mxu0 0.0
  %986 = vmatpush1.msra.mxu0 %v883
  %987 = vmatprep.subr.mxu0 0.0
  %988 = vmatpush1.msra.mxu0 %v882
  %989 = vmatprep.subr.mxu0 0.0
  %990 = vmatpush1.msra.mxu0 %v881
  %991 = vmatprep.subr.mxu0 0.0
  %992 = vmatpush1.msra.mxu0 %v880
  %993 = vmatprep.subr.mxu0 0.0
  %994 = vmatpush1.msra.mxu0 %v879
  %995 = vmatprep.subr.mxu0 0.0
  %996 = vmatpush1.msra.mxu0 %v878
  %997 = vmatprep.subr.mxu0 0.0
  %998 = vmatpush1.msra.mxu0 %v877
  %999 = vmatprep.subr.mxu0 0.0
  %1000 = vmatpush1.msra.mxu0 %v876
  %1001 = vmatprep.subr.mxu0 0.0
  %1002 = vmatpush1.msra.mxu0 %v875
  %1003 = vmatprep.subr.mxu0 0.0
  %1004 = vmatpush2.msra.mxu0 %v906
  %1005 = vmatprep.subr.mxu0 0.0
  %1006 = vmatpush2.msra.mxu0 %v905
  %1007 = vmatprep.subr.mxu0 0.0
  %1008 = vmatpush2.msra.mxu0 %v904
  %1009 = vmatprep.subr.mxu0 0.0
  %1010 = vmatpush2.msra.mxu0 %v903
  %1011 = vmatprep.subr.mxu0 0.0
  %1012 = vmatpush2.msra.mxu0 %v902
  %1013 = vmatprep.subr.mxu0 0.0
  %1014 = vmatpush2.msra.mxu0 %v901
  %1015 = vmatprep.subr.mxu0 0.0
  %1016 = vmatpush2.msra.mxu0 %v900
  %1017 = vmatprep.subr.mxu0 0.0
  %1018 = vmatpush2.msra.mxu0 %v899
  %1019 = vmatprep.subr.mxu0 0.0
  %1020 = vmatpush2.msra.mxu0 %v898
  %1021 = vmatprep.subr.mxu0 0.0
  %1022 = vmatpush2.msra.mxu0 %v897
  %1023 = vmatprep.subr.mxu0 0.0
  %1024 = vmatpush2.msra.mxu0 %v896
  %1025 = vmatprep.subr.mxu0 0.0
  %1026 = vmatpush2.msra.mxu0 %v895
  %1027 = vmatprep.subr.mxu0 0.0
  %1028 = vmatpush2.msra.mxu0 %v894
  %1029 = vmatprep.subr.mxu0 0.0
  %1030 = vmatpush2.msra.mxu0 %v893
  %1031 = vmatprep.subr.mxu0 0.0
  %1032 = vmatpush2.msra.mxu0 %v892
  %1033 = vmatprep.subr.mxu0 0.0
  %1034 = vmatpush2.msra.mxu0 %v891
  %1035 = vmatprep.mubr.f32.mxu0 %v752
  %1036 = vmatmul.mubr.f32.gmra.mxu0 %v751
  %v1037 = vpop.f32.mrf.mxu0
  %v1038 = vadd.f32 0.0, %v1037
  %v1039 = vpop.f32.mrf.mxu0
  %1040 = vmatprep.mubr.f32.mxu0 %v754
  %1041 = vmatmul.mubr.f32.gmra.mxu0 %v753
  %v1042 = vpop.f32.mrf.mxu0
  %v1043 = vadd.f32 0.0, %v1042
  %v1044 = vpop.f32.mrf.mxu0
  %1045 = vmatprep.mubr.f32.mxu0 %v773
  %1046 = vmatmul.mubr.f32.gmra.mxu0 %v770
  %v1047 = vpop.f32.mrf.mxu0
  %v1048 = vadd.f32 0.0, %v1047
  %v1049 = vpop.f32.mrf.mxu0
  %1050 = vmatprep.mubr.f32.mxu0 %v777
  %1051 = vmatmul.mubr.f32.gmra.mxu0 %v775
  %v1052 = vpop.f32.mrf.mxu0
  %v1053 = vadd.f32 0.0, %v1052
  %v1054 = vpop.f32.mrf.mxu0
  %1055 = vdwg.mxu0
  %1056 = vmatprep.subr.mxu0 0.0
  %1057 = vmatpush1.msra.mxu0 %v922
  %1058 = vmatprep.subr.mxu0 0.0
  %1059 = vmatpush1.msra.mxu0 %v921
  %1060 = vmatprep.subr.mxu0 0.0
  %1061 = vmatpush1.msra.mxu0 %v920
  %1062 = vmatprep.subr.mxu0 0.0
  %1063 = vmatpush1.msra.mxu0 %v919
  %1064 = vmatprep.subr.mxu0 0.0
  %1065 = vmatpush1.msra.mxu0 %v918
  %1066 = vmatprep.subr.mxu0 0.0
  %1067 = vmatpush1.msra.mxu0 %v917
  %1068 = vmatprep.subr.mxu0 0.0
  %1069 = vmatpush1.msra.mxu0 %v916
  %1070 = vmatprep.subr.mxu0 0.0
  %1071 = vmatpush1.msra.mxu0 %v915
  %1072 = vmatprep.subr.mxu0 0.0
  %1073 = vmatpush1.msra.mxu0 %v914
  %1074 = vmatprep.subr.mxu0 0.0
  %1075 = vmatpush1.msra.mxu0 %v913
  %1076 = vmatprep.subr.mxu0 0.0
  %1077 = vmatpush1.msra.mxu0 %v912
  %1078 = vmatprep.subr.mxu0 0.0
  %1079 = vmatpush1.msra.mxu0 %v911
  %1080 = vmatprep.subr.mxu0 0.0
  %1081 = vmatpush1.msra.mxu0 %v910
  %1082 = vmatprep.subr.mxu0 0.0
  %1083 = vmatpush1.msra.mxu0 %v909
  %1084 = vmatprep.subr.mxu0 0.0
  %1085 = vmatpush1.msra.mxu0 %v908
  %1086 = vmatprep.subr.mxu0 0.0
  %1087 = vmatpush1.msra.mxu0 %v907
  %1088 = vmatprep.subr.mxu0 0.0
  %1089 = vmatpush2.msra.mxu0 %v938
  %1090 = vmatprep.subr.mxu0 0.0
  %1091 = vmatpush2.msra.mxu0 %v937
  %1092 = vmatprep.subr.mxu0 0.0
  %1093 = vmatpush2.msra.mxu0 %v936
  %1094 = vmatprep.subr.mxu0 0.0
  %1095 = vmatpush2.msra.mxu0 %v935
  %1096 = vmatprep.subr.mxu0 0.0
  %1097 = vmatpush2.msra.mxu0 %v934
  %1098 = vmatprep.subr.mxu0 0.0
  %1099 = vmatpush2.msra.mxu0 %v933
  %1100 = vmatprep.subr.mxu0 0.0
  %1101 = vmatpush2.msra.mxu0 %v932
  %1102 = vmatprep.subr.mxu0 0.0
  %1103 = vmatpush2.msra.mxu0 %v931
  %1104 = vmatprep.subr.mxu0 0.0
  %1105 = vmatpush2.msra.mxu0 %v930
  %1106 = vmatprep.subr.mxu0 0.0
  %1107 = vmatpush2.msra.mxu0 %v929
  %1108 = vmatprep.subr.mxu0 0.0
  %1109 = vmatpush2.msra.mxu0 %v928
  %1110 = vmatprep.subr.mxu0 0.0
  %1111 = vmatpush2.msra.mxu0 %v927
  %1112 = vmatprep.subr.mxu0 0.0
  %1113 = vmatpush2.msra.mxu0 %v926
  %1114 = vmatprep.subr.mxu0 0.0
  %1115 = vmatpush2.msra.mxu0 %v925
  %1116 = vmatprep.subr.mxu0 0.0
  %1117 = vmatpush2.msra.mxu0 %v924
  %1118 = vmatprep.subr.mxu0 0.0
  %1119 = vmatpush2.msra.mxu0 %v923
  %1120 = vmatprep.mubr.f32.mxu0 %v802
  %1121 = vmatmul.mubr.f32.gmra.mxu0 %v799
  %v1122 = vpop.f32.mrf.mxu0
  %v1123 = vadd.f32 %v1038, %v1122
  %v1124 = vpop.f32.mrf.mxu0
  %1125 = vmatprep.mubr.f32.mxu0 %v806
  %1126 = vmatmul.mubr.f32.gmra.mxu0 %v804
  %v1127 = vpop.f32.mrf.mxu0
  %v1128 = vadd.f32 %v1043, %v1127
  %v1129 = vpop.f32.mrf.mxu0
  %1130 = vmatprep.mubr.f32.mxu0 %v821
  %1131 = vmatmul.mubr.f32.gmra.mxu0 %v818
  %v1132 = vpop.f32.mrf.mxu0
  %v1133 = vadd.f32 %v1048, %v1132
  %v1134 = vpop.f32.mrf.mxu0
  %1135 = vmatprep.mubr.f32.mxu0 %v825
  %1136 = vmatmul.mubr.f32.gmra.mxu0 %v823
  %v1137 = vpop.f32.mrf.mxu0
  %v1138 = vadd.f32 %v1053, %v1137
  %v1139 = vpop.f32.mrf.mxu0
  %1140 = vdwg.mxu0
  %1141 = vmatprep.subr.mxu0 0.0
  %1142 = vmatpush1.msra.mxu0 %v954
  %1143 = vmatprep.subr.mxu0 0.0
  %1144 = vmatpush1.msra.mxu0 %v953
  %1145 = vmatprep.subr.mxu0 0.0
  %1146 = vmatpush1.msra.mxu0 %v952
  %1147 = vmatprep.subr.mxu0 0.0
  %1148 = vmatpush1.msra.mxu0 %v951
  %1149 = vmatprep.subr.mxu0 0.0
  %1150 = vmatpush1.msra.mxu0 %v950
  %1151 = vmatprep.subr.mxu0 0.0
  %1152 = vmatpush1.msra.mxu0 %v949
  %1153 = vmatprep.subr.mxu0 0.0
  %1154 = vmatpush1.msra.mxu0 %v948
  %1155 = vmatprep.subr.mxu0 0.0
  %1156 = vmatpush1.msra.mxu0 %v947
  %1157 = vmatprep.subr.mxu0 0.0
  %1158 = vmatpush1.msra.mxu0 %v946
  %1159 = vmatprep.subr.mxu0 0.0
  %1160 = vmatpush1.msra.mxu0 %v945
  %1161 = vmatprep.subr.mxu0 0.0
  %1162 = vmatpush1.msra.mxu0 %v944
  %1163 = vmatprep.subr.mxu0 0.0
  %1164 = vmatpush1.msra.mxu0 %v943
  %1165 = vmatprep.subr.mxu0 0.0
  %1166 = vmatpush1.msra.mxu0 %v942
  %1167 = vmatprep.subr.mxu0 0.0
  %1168 = vmatpush1.msra.mxu0 %v941
  %1169 = vmatprep.subr.mxu0 0.0
  %1170 = vmatpush1.msra.mxu0 %v940
  %1171 = vmatprep.subr.mxu0 0.0
  %1172 = vmatpush1.msra.mxu0 %v939
  %1173 = vmatprep.subr.mxu0 0.0
  %1174 = vmatpush2.msra.mxu0 %v970
  %1175 = vmatprep.subr.mxu0 0.0
  %1176 = vmatpush2.msra.mxu0 %v969
  %1177 = vmatprep.subr.mxu0 0.0
  %1178 = vmatpush2.msra.mxu0 %v968
  %1179 = vmatprep.subr.mxu0 0.0
  %1180 = vmatpush2.msra.mxu0 %v967
  %1181 = vmatprep.subr.mxu0 0.0
  %1182 = vmatpush2.msra.mxu0 %v966
  %1183 = vmatprep.subr.mxu0 0.0
  %1184 = vmatpush2.msra.mxu0 %v965
  %1185 = vmatprep.subr.mxu0 0.0
  %1186 = vmatpush2.msra.mxu0 %v964
  %1187 = vmatprep.subr.mxu0 0.0
  %1188 = vmatpush2.msra.mxu0 %v963
  %1189 = vmatprep.subr.mxu0 0.0
  %1190 = vmatpush2.msra.mxu0 %v962
  %1191 = vmatprep.subr.mxu0 0.0
  %1192 = vmatpush2.msra.mxu0 %v961
  %1193 = vmatprep.subr.mxu0 0.0
  %1194 = vmatpush2.msra.mxu0 %v960
  %1195 = vmatprep.subr.mxu0 0.0
  %1196 = vmatpush2.msra.mxu0 %v959
  %1197 = vmatprep.subr.mxu0 0.0
  %1198 = vmatpush2.msra.mxu0 %v958
  %1199 = vmatprep.subr.mxu0 0.0
  %1200 = vmatpush2.msra.mxu0 %v957
  %1201 = vmatprep.subr.mxu0 0.0
  %1202 = vmatpush2.msra.mxu0 %v956
  %1203 = vmatprep.subr.mxu0 0.0
  %1204 = vmatpush2.msra.mxu0 %v955
  %1205 = vmatprep.mubr.f32.mxu0 %v847
  %1206 = vmatmul.mubr.f32.gmra.mxu0 %v844
  %v1207 = vpop.f32.mrf.mxu0
  %v1208 = vadd.f32 %v1123, %v1207
  %v1209 = vpop.f32.mrf.mxu0
  %1210 = vmatprep.mubr.f32.mxu0 %v851
  %1211 = vmatmul.mubr.f32.gmra.mxu0 %v849
  %v1212 = vpop.f32.mrf.mxu0
  %v1213 = vadd.f32 %v1128, %v1212
  %v1214 = vpop.f32.mrf.mxu0
  %1215 = vmatprep.mubr.f32.mxu0 %v866
  %1216 = vmatmul.mubr.f32.gmra.mxu0 %v863
  %v1217 = vpop.f32.mrf.mxu0
  %v1218 = vadd.f32 %v1133, %v1217
  %v1219 = vpop.f32.mrf.mxu0
  %1220 = vmatprep.mubr.f32.mxu0 %v870
  %1221 = vmatmul.mubr.f32.gmra.mxu0 %v868
  %v1222 = vpop.f32.mrf.mxu0
  %v1223 = vadd.f32 %v1138, %v1222
  %v1224 = vpop.f32.mrf.mxu0
  %1225 = vdwg.mxu0
  %v1226 = vld [vmem:[%s5] sm:$0x1]
  %v1227 = vld [vmem:[%s6] sm:$0x1]
  %1228 = vmatprep.subr.mxu0 0.0
  %1229 = vmatpush1.msra.mxu0 %v44
  %1230 = vmatprep.subr.mxu0 0.0
  %1231 = vmatpush1.msra.mxu0 %v43
  %1232 = vmatprep.subr.mxu0 0.0
  %1233 = vmatpush1.msra.mxu0 %v42
  %1234 = vmatprep.subr.mxu0 0.0
  %1235 = vmatpush1.msra.mxu0 %v41
  %1236 = vmatprep.subr.mxu0 0.0
  %1237 = vmatpush1.msra.mxu0 %v40
  %1238 = vmatprep.subr.mxu0 0.0
  %1239 = vmatpush1.msra.mxu0 %v39
  %1240 = vmatprep.subr.mxu0 0.0
  %1241 = vmatpush1.msra.mxu0 %v38
  %1242 = vmatprep.subr.mxu0 0.0
  %1243 = vmatpush1.msra.mxu0 %v37
  %1244 = vmatprep.subr.mxu0 0.0
  %1245 = vmatpush1.msra.mxu0 %v36
  %1246 = vmatprep.subr.mxu0 0.0
  %1247 = vmatpush1.msra.mxu0 %v35
  %1248 = vmatprep.subr.mxu0 0.0
  %1249 = vmatpush1.msra.mxu0 %v34
  %1250 = vmatprep.subr.mxu0 0.0
  %1251 = vmatpush1.msra.mxu0 %v33
  %1252 = vmatprep.subr.mxu0 0.0
  %1253 = vmatpush1.msra.mxu0 %v32
  %1254 = vmatprep.subr.mxu0 0.0
  %1255 = vmatpush1.msra.mxu0 %v31
  %1256 = vmatprep.subr.mxu0 0.0
  %1257 = vmatpush1.msra.mxu0 %v30
  %1258 = vmatprep.subr.mxu0 0.0
  %1259 = vmatpush1.msra.mxu0 %v29
  %1260 = vmatprep.subr.mxu0 0.0
  %1261 = vmatpush2.msra.mxu0 0.0
  %1262 = vmatprep.subr.mxu0 0.0
  %1263 = vmatpush2.msra.mxu0 0.0
  %1264 = vmatprep.subr.mxu0 0.0
  %1265 = vmatpush2.msra.mxu0 0.0
  %1266 = vmatprep.subr.mxu0 0.0
  %1267 = vmatpush2.msra.mxu0 0.0
  %1268 = vmatprep.subr.mxu0 0.0
  %1269 = vmatpush2.msra.mxu0 0.0
  %1270 = vmatprep.subr.mxu0 0.0
  %1271 = vmatpush2.msra.mxu0 0.0
  %1272 = vmatprep.subr.mxu0 0.0
  %1273 = vmatpush2.msra.mxu0 0.0
  %1274 = vmatprep.subr.mxu0 0.0
  %1275 = vmatpush2.msra.mxu0 0.0
  %1276 = vmatprep.subr.mxu0 0.0
  %1277 = vmatpush2.msra.mxu0 0.0
  %1278 = vmatprep.subr.mxu0 0.0
  %1279 = vmatpush2.msra.mxu0 0.0
  %1280 = vmatprep.subr.mxu0 0.0
  %1281 = vmatpush2.msra.mxu0 0.0
  %1282 = vmatprep.subr.mxu0 0.0
  %1283 = vmatpush2.msra.mxu0 0.0
  %1284 = vmatprep.subr.mxu0 0.0
  %1285 = vmatpush2.msra.mxu0 0.0
  %1286 = vmatprep.subr.mxu0 0.0
  %1287 = vmatpush2.msra.mxu0 0.0
  %1288 = vmatprep.subr.mxu0 0.0
  %1289 = vmatpush2.msra.mxu0 0.0
  %1290 = vmatprep.subr.mxu0 0.0
  %1291 = vmatpush2.msra.mxu0 0.0
  %1292 = vmatprep.mubr.f32.mxu0 0.0
  %1293 = vmatmul.mubr.f32.gmra.mxu0 %v1208
  %v1294 = vpop.f32.mrf.mxu0
  %v1295 = vadd.f32 0.0, %v1294
  %v1296 = vpop.f32.mrf.mxu0
  %1297 = vmatprep.mubr.f32.mxu0 0.0
  %1298 = vmatmul.mubr.f32.gmra.mxu0 %v1213
  %v1299 = vpop.f32.mrf.mxu0
  %v1300 = vadd.f32 0.0, %v1299
  %v1301 = vpop.f32.mrf.mxu0
  %1302 = vmatprep.mubr.f32.mxu0 0.0
  %1303 = vmatmul.mubr.f32.gmra.mxu0 %v1218
  %v1304 = vpop.f32.mrf.mxu0
  %v1305 = vadd.f32 0.0, %v1304
  %v1306 = vpop.f32.mrf.mxu0
  %1307 = vmatprep.mubr.f32.mxu0 0.0
  %1308 = vmatmul.mubr.f32.gmra.mxu0 %v1223
  %v1309 = vpop.f32.mrf.mxu0
  %v1310 = vadd.f32 0.0, %v1309
  %v1311 = vpop.f32.mrf.mxu0
  %1312 = vdwg.mxu0
  %v1313 = vsel %vm392, %v1295, 0.0
  %v1314 = vsel %vm392, %v1300, 0.0
  %v1315 = vadd.f32 %v1313, %v1314
  %v1316 = vsel %vm392, %v1305, 0.0
  %v1317 = vadd.f32 %v1315, %v1316
  %v1318 = vsel %vm392, %v1310, 0.0
  %v1319 = vadd.f32 %v1317, %v1318
  %v1320 = vrot.slane %v1319, 4
  %v1321 = vadd.f32 %v1319, %v1320
  %v1322 = vrot.slane %v1321, 2
  %v1323 = vadd.f32 %v1321, %v1322
  %v1324 = vrot.slane %v1323, 1
  %v1325 = vadd.f32 %v1323, %v1324
  %v1326 = vmul.f32 %v1208, %v1208
  %v1327 = vmul.f32 %v1213, %v1213
  %v1328 = vmul.f32 %v1218, %v1218
  %v1329 = vmul.f32 %v1223, %v1223
  %1330 = vmatprep.subr.mxu0 0.0
  %1331 = vmatpush1.msra.mxu0 %v44
  %1332 = vmatprep.subr.mxu0 0.0
  %1333 = vmatpush1.msra.mxu0 %v43
  %1334 = vmatprep.subr.mxu0 0.0
  %1335 = vmatpush1.msra.mxu0 %v42
  %1336 = vmatprep.subr.mxu0 0.0
  %1337 = vmatpush1.msra.mxu0 %v41
  %1338 = vmatprep.subr.mxu0 0.0
  %1339 = vmatpush1.msra.mxu0 %v40
  %1340 = vmatprep.subr.mxu0 0.0
  %1341 = vmatpush1.msra.mxu0 %v39
  %1342 = vmatprep.subr.mxu0 0.0
  %1343 = vmatpush1.msra.mxu0 %v38
  %1344 = vmatprep.subr.mxu0 0.0
  %1345 = vmatpush1.msra.mxu0 %v37
  %1346 = vmatprep.subr.mxu0 0.0
  %1347 = vmatpush1.msra.mxu0 %v36
  %1348 = vmatprep.subr.mxu0 0.0
  %1349 = vmatpush1.msra.mxu0 %v35
  %1350 = vmatprep.subr.mxu0 0.0
  %1351 = vmatpush1.msra.mxu0 %v34
  %1352 = vmatprep.subr.mxu0 0.0
  %1353 = vmatpush1.msra.mxu0 %v33
  %1354 = vmatprep.subr.mxu0 0.0
  %1355 = vmatpush1.msra.mxu0 %v32
  %1356 = vmatprep.subr.mxu0 0.0
  %1357 = vmatpush1.msra.mxu0 %v31
  %1358 = vmatprep.subr.mxu0 0.0
  %1359 = vmatpush1.msra.mxu0 %v30
  %1360 = vmatprep.subr.mxu0 0.0
  %1361 = vmatpush1.msra.mxu0 %v29
  %1362 = vmatprep.subr.mxu0 0.0
  %1363 = vmatpush2.msra.mxu0 0.0
  %1364 = vmatprep.subr.mxu0 0.0
  %1365 = vmatpush2.msra.mxu0 0.0
  %1366 = vmatprep.subr.mxu0 0.0
  %1367 = vmatpush2.msra.mxu0 0.0
  %1368 = vmatprep.subr.mxu0 0.0
  %1369 = vmatpush2.msra.mxu0 0.0
  %1370 = vmatprep.subr.mxu0 0.0
  %1371 = vmatpush2.msra.mxu0 0.0
  %1372 = vmatprep.subr.mxu0 0.0
  %1373 = vmatpush2.msra.mxu0 0.0
  %1374 = vmatprep.subr.mxu0 0.0
  %1375 = vmatpush2.msra.mxu0 0.0
  %1376 = vmatprep.subr.mxu0 0.0
  %1377 = vmatpush2.msra.mxu0 0.0
  %1378 = vmatprep.subr.mxu0 0.0
  %1379 = vmatpush2.msra.mxu0 0.0
  %1380 = vmatprep.subr.mxu0 0.0
  %1381 = vmatpush2.msra.mxu0 0.0
  %1382 = vmatprep.subr.mxu0 0.0
  %1383 = vmatpush2.msra.mxu0 0.0
  %1384 = vmatprep.subr.mxu0 0.0
  %1385 = vmatpush2.msra.mxu0 0.0
  %1386 = vmatprep.subr.mxu0 0.0
  %1387 = vmatpush2.msra.mxu0 0.0
  %1388 = vmatprep.subr.mxu0 0.0
  %1389 = vmatpush2.msra.mxu0 0.0
  %1390 = vmatprep.subr.mxu0 0.0
  %1391 = vmatpush2.msra.mxu0 0.0
  %1392 = vmatprep.subr.mxu0 0.0
  %1393 = vmatpush2.msra.mxu0 0.0
  %1394 = vmatprep.mubr.f32.mxu0 0.0
  %1395 = vmatmul.mubr.f32.gmra.mxu0 %v1326
  %v1396 = vpop.f32.mrf.mxu0
  %v1397 = vadd.f32 0.0, %v1396
  %v1398 = vpop.f32.mrf.mxu0
  %1399 = vmatprep.mubr.f32.mxu0 0.0
  %1400 = vmatmul.mubr.f32.gmra.mxu0 %v1327
  %v1401 = vpop.f32.mrf.mxu0
  %v1402 = vadd.f32 0.0, %v1401
  %v1403 = vpop.f32.mrf.mxu0
  %1404 = vmatprep.mubr.f32.mxu0 0.0
  %1405 = vmatmul.mubr.f32.gmra.mxu0 %v1328
  %v1406 = vpop.f32.mrf.mxu0
  %v1407 = vadd.f32 0.0, %v1406
  %v1408 = vpop.f32.mrf.mxu0
  %1409 = vmatprep.mubr.f32.mxu0 0.0
  %1410 = vmatmul.mubr.f32.gmra.mxu0 %v1329
  %v1411 = vpop.f32.mrf.mxu0
  %v1412 = vadd.f32 0.0, %v1411
  %v1413 = vpop.f32.mrf.mxu0
  %1414 = vdwg.mxu0
  %v1415 = vsel %vm392, %v1397, 0.0
  %v1416 = vsel %vm392, %v1402, 0.0
  %v1417 = vadd.f32 %v1415, %v1416
  %v1418 = vsel %vm392, %v1407, 0.0
  %v1419 = vadd.f32 %v1417, %v1418
  %v1420 = vsel %vm392, %v1412, 0.0
  %v1421 = vadd.f32 %v1419, %v1420
  %v1422 = vrot.slane %v1421, 4
  %v1423 = vadd.f32 %v1421, %v1422
  %v1424 = vrot.slane %v1423, 2
  %v1425 = vadd.f32 %v1423, %v1424
  %v1426 = vrot.slane %v1425, 1
  %v1427 = vadd.f32 %v1425, %v1426
  %v1428 = vmul.f32 %v1325, 0.001953125
  %v1429 = vmul.f32 %v1427, 0.001953125
  %v1430 = vmul.f32 %v1428, %v1428
  %v1431 = vsub.f32 %v1429, %v1430
  %v1432 = vmax.f32 %v1431, 0.0
  %v1433 = vadd.f32 %v1432, 1e-05
  %v1434 = vrsqrt.pop %v1433
  %v1435 = vmul.f32 %v1226, %v1434
  %v1436 = vmul.f32 %v1428, %v1435
  %v1437 = vsub.f32 %v1227, %v1436
  %v1439 = vlaneseq
  %v1440 = vshrl.u32 %v1439, 7
  %v1441 = vsub.s32 0, %v1440
  %v1442 = vrot.slane %v1435, %v1441
  %1443 = vrot.lane.b32.xlu0 %v1442, 8
  %v1444 = vpop.permute.xlu0 %1443
  %1446 = vrot.lane.b32.xlu0 %v1442, 16
  %v1447 = vpop.permute.xlu0 %1446
  %1449 = vrot.lane.b32.xlu0 %v1442, 24
  %v1450 = vpop.permute.xlu0 %1449
  %1452 = vrot.lane.b32.xlu0 %v1442, 32
  %v1453 = vpop.permute.xlu0 %1452
  %1455 = vrot.lane.b32.xlu0 %v1442, 40
  %v1456 = vpop.permute.xlu0 %1455
  %1458 = vrot.lane.b32.xlu0 %v1442, 48
  %v1459 = vpop.permute.xlu0 %1458
  %1461 = vrot.lane.b32.xlu0 %v1442, 56
  %v1462 = vpop.permute.xlu0 %1461
  %1464 = vrot.lane.b32.xlu0 %v1442, 64
  %v1465 = vpop.permute.xlu0 %1464
  %1467 = vrot.lane.b32.xlu0 %v1442, 72
  %v1468 = vpop.permute.xlu0 %1467
  %1470 = vrot.lane.b32.xlu0 %v1442, 80
  %v1471 = vpop.permute.xlu0 %1470
  %1473 = vrot.lane.b32.xlu0 %v1442, 88
  %v1474 = vpop.permute.xlu0 %1473
  %1476 = vrot.lane.b32.xlu0 %v1442, 96
  %v1477 = vpop.permute.xlu0 %1476
  %1479 = vrot.lane.b32.xlu0 %v1442, 104
  %v1480 = vpop.permute.xlu0 %1479
  %1482 = vrot.lane.b32.xlu0 %v1442, 112
  %v1483 = vpop.permute.xlu0 %1482
  %1485 = vrot.lane.b32.xlu0 %v1442, 120
  %v1486 = vpop.permute.xlu0 %1485
  %v1488 = vsel %vm392, %v1435, %v1444
  %v1489 = vsel %vm569, %v1488, %v1447
  %v1490 = vsel %vm571, %v1489, %v1450
  %v1491 = vsel %vm573, %v1490, %v1453
  %v1492 = vsel %vm575, %v1491, %v1456
  %v1493 = vsel %vm577, %v1492, %v1459
  %v1494 = vsel %vm579, %v1493, %v1462
  %v1495 = vsel %vm581, %v1494, %v1465
  %v1496 = vsel %vm583, %v1495, %v1468
  %v1497 = vsel %vm585, %v1496, %v1471
  %v1498 = vsel %vm587, %v1497, %v1474
  %v1499 = vsel %vm589, %v1498, %v1477
  %v1500 = vsel %vm591, %v1499, %v1480
  %v1501 = vsel %vm593, %v1500, %v1483
  %v1502 = vsel %vm595, %v1501, %v1486
  %v1503 = vlaneseq
  %v1504 = vshrl.u32 %v1503, 7
  %v1505 = vsub.s32 0, %v1504
  %v1506 = vrot.slane %v1502, %v1505
  %v1507 = vmul.f32 %v1208, %v1506
  %v1508 = vmul.f32 %v1213, %v1506
  %v1509 = vmul.f32 %v1218, %v1506
  %v1510 = vmul.f32 %v1223, %v1506
  %v1512 = vlaneseq
  %v1513 = vshrl.u32 %v1512, 7
  %v1514 = vsub.s32 0, %v1513
  %v1515 = vrot.slane %v1437, %v1514
  %1516 = vrot.lane.b32.xlu0 %v1515, 8
  %v1517 = vpop.permute.xlu0 %1516
  %1519 = vrot.lane.b32.xlu0 %v1515, 16
  %v1520 = vpop.permute.xlu0 %1519
  %1522 = vrot.lane.b32.xlu0 %v1515, 24
  %v1523 = vpop.permute.xlu0 %1522
  %1525 = vrot.lane.b32.xlu0 %v1515, 32
  %v1526 = vpop.permute.xlu0 %1525
  %1528 = vrot.lane.b32.xlu0 %v1515, 40
  %v1529 = vpop.permute.xlu0 %1528
  %1531 = vrot.lane.b32.xlu0 %v1515, 48
  %v1532 = vpop.permute.xlu0 %1531
  %1534 = vrot.lane.b32.xlu0 %v1515, 56
  %v1535 = vpop.permute.xlu0 %1534
  %1537 = vrot.lane.b32.xlu0 %v1515, 64
  %v1538 = vpop.permute.xlu0 %1537
  %1540 = vrot.lane.b32.xlu0 %v1515, 72
  %v1541 = vpop.permute.xlu0 %1540
  %1543 = vrot.lane.b32.xlu0 %v1515, 80
  %v1544 = vpop.permute.xlu0 %1543
  %1546 = vrot.lane.b32.xlu0 %v1515, 88
  %v1547 = vpop.permute.xlu0 %1546
  %1549 = vrot.lane.b32.xlu0 %v1515, 96
  %v1550 = vpop.permute.xlu0 %1549
  %1552 = vrot.lane.b32.xlu0 %v1515, 104
  %v1553 = vpop.permute.xlu0 %1552
  %1555 = vrot.lane.b32.xlu0 %v1515, 112
  %v1556 = vpop.permute.xlu0 %1555
  %1558 = vrot.lane.b32.xlu0 %v1515, 120
  %v1559 = vpop.permute.xlu0 %1558
  %v1561 = vsel %vm392, %v1437, %v1517
  %v1562 = vsel %vm569, %v1561, %v1520
  %v1563 = vsel %vm571, %v1562, %v1523
  %v1564 = vsel %vm573, %v1563, %v1526
  %v1565 = vsel %vm575, %v1564, %v1529
  %v1566 = vsel %vm577, %v1565, %v1532
  %v1567 = vsel %vm579, %v1566, %v1535
  %v1568 = vsel %vm581, %v1567, %v1538
  %v1569 = vsel %vm583, %v1568, %v1541
  %v1570 = vsel %vm585, %v1569, %v1544
  %v1571 = vsel %vm587, %v1570, %v1547
  %v1572 = vsel %vm589, %v1571, %v1550
  %v1573 = vsel %vm591, %v1572, %v1553
  %v1574 = vsel %vm593, %v1573, %v1556
  %v1575 = vsel %vm595, %v1574, %v1559
  %v1576 = vlaneseq
  %v1577 = vshrl.u32 %v1576, 7
  %v1578 = vsub.s32 0, %v1577
  %v1579 = vrot.slane %v1575, %v1578
  %v1580 = vadd.f32 %v1507, %v1579
  %v1581 = vadd.f32 %v1508, %v1579
  %v1582 = vadd.f32 %v1509, %v1579
  %v1583 = vadd.f32 %v1510, %v1579
  %vm1584 = vcmp.gt.f32.partialorder %v1580, 0.0
  %vm1585 = vcmp.gt.f32.partialorder %v1581, 0.0
  %vm1586 = vcmp.gt.f32.partialorder %v1582, 0.0
  %vm1587 = vcmp.gt.f32.partialorder %v1583, 0.0
  %v1588 = vmul.f32 %v1580, 0.05
  %v1589 = vmul.f32 %v1581, 0.05
  %v1590 = vmul.f32 %v1582, 0.05
  %v1591 = vmul.f32 %v1583, 0.05
  %v1592 = vsel %vm1584, %v1580, %v1588
  %v1593 = vsel %vm1585, %v1581, %v1589
  %v1594 = vsel %vm1586, %v1582, %v1590
  %v1595 = vsel %vm1587, %v1583, %v1591
  %1596 = vst [vmem:[%s8] sm:$0xff] %v1592
  %1597 = vst [vmem:[%s8 + $0x8] sm:$0xff] %v1593
  %1598 = vst [vmem:[%s8 + $0x10] sm:$0xff] %v1594
  %1599 = vst [vmem:[%s8 + $0x18] sm:$0xff] %v1595
  // Predicated region
  $region34: #{conv_block.1} parent=0 // pred_check
    _
  $region35: #{conv_block.1} parent=0 // pred_check_branch
    %1601 = sbr.rel (0) target = $region37
  $region36: #{conv_block.1} parent=0 // pred_region
    _
  $region37: #{conv_block.1} parent=0 // pred_fallthru
    _
  // Predicated region
  $region38: #{conv_block.1} parent=0 // pred_check
    _
  $region39: #{conv_block.1} parent=0 // pred_check_branch
    %1603 = sbr.rel (0) target = $region41
  $region40: #{conv_block.1} parent=0 // pred_region
    _
  $region41: #{conv_block.1} parent=0 // pred_fallthru
    _

</llo_original>
